<compile_context>
chip_gen: v6e
topology: v6e:2x2x1
jax: 0.10.0
libtpu: 0.0.40
codegen_flags: <defaults>
</compile_context>

<pallas_src>
import itertools

import jax
import jax.numpy as jnp
from jax.experimental import pallas as pl
from jax.experimental.pallas import tpu as pltpu

BN_EPS = 1e-5
LANE = 128


def _round_up(x, m):
    return (x + m - 1) // m * m


# ---------------------------------------------------------------------------
# Fused kernel body: grid = (num_real_slots,), one slot per actual edge type.
# ---------------------------------------------------------------------------
def _kernel(src_sel_ref, dst_sel_ref, out_sel_ref, first_ref,   # scalar prefetch (SMEM)
            coef_ref,                                           # SMEM f32: 1 + eps per slot
            a_ref, xs_ref, xd_ref, w1_ref, w2_ref, b_ref,       # VMEM input blocks
            o_ref):                                             # VMEM output block
    slot = pl.program_id(0)

    # ---- GINConv ----------------------------------------------------------
    # Sum aggregation as a dense-adjacency matmul.  A and x_src are stored bf16
    # (integer edge counts are exact in bf16) -> single-pass MXU, f32 accumulation.
    agg = jnp.dot(a_ref[...], xs_ref[...], preferred_element_type=jnp.float32)
    h = coef_ref[slot] * xd_ref[...] + agg          # coef = 1 + eps (SMEM scalar bcast)

    # Source-type MLP; eval-mode BatchNorm folded into the (bf16) linear weights.
    z = jnp.dot(h.astype(jnp.bfloat16), w1_ref[...],
                preferred_element_type=jnp.float32) + b_ref[0:1, :]
    z = jnp.maximum(z, 0.0)
    z = jnp.dot(z.astype(jnp.bfloat16), w2_ref[...],
                preferred_element_type=jnp.float32) + b_ref[1:2, :]
    r = jnp.maximum(z, 0.0)

    # ---- HeteroConv aggr='sum' --------------------------------------------
    # Output block is revisited across the contiguous run of slots sharing a
    # destination type; first slot overwrites (no zero-init pass), rest accumulate.
    @pl.when(first_ref[slot] == 1)
    def _init():
        o_ref[...] = r

    @pl.when(first_ref[slot] == 0)
    def _accumulate():
        o_ref[...] += r


def _build_fused_call(num_slots, G, N_pad, C_pad):
    # index_maps receive (grid_idx, *scalar_prefetch_refs).
    def im_slot(i, src, dst, out, first):
        return (i, 0, 0)

    def im_src(i, src, dst, out, first):
        return (src[i], 0, 0)

    def im_dst(i, src, dst, out, first):
        return (dst[i], 0, 0)

    def im_out(i, src, dst, out, first):
        return (out[i], 0, 0)

    coef_spec = pl.BlockSpec(memory_space=pltpu.MemorySpace.SMEM)   # whole array in SMEM
    a_spec = pl.BlockSpec((None, N_pad, N_pad), im_slot)
    xs_spec = pl.BlockSpec((None, N_pad, C_pad), im_src)
    xd_spec = pl.BlockSpec((None, N_pad, C_pad), im_dst)
    w1_spec = pl.BlockSpec((None, C_pad, C_pad), im_src)
    w2_spec = pl.BlockSpec((None, C_pad, C_pad), im_src)
    b_spec = pl.BlockSpec((None, 8, C_pad), im_src)
    out_spec = pl.BlockSpec((None, N_pad, C_pad), im_out)

    # Per-block byte sizes (bf16 where applicable).
    a_b = N_pad * N_pad * 2
    xs_b = N_pad * C_pad * 2
    xd_b = N_pad * C_pad * 4
    w_b = C_pad * C_pad * 2
    b_b = 8 * C_pad * 4
    out_b = N_pad * C_pad * 4

    flops = num_slots * (2 * N_pad * N_pad * C_pad + 2 * 2 * N_pad * C_pad * C_pad)
    bytes_accessed = num_slots * (a_b + xs_b + xd_b + 2 * w_b + b_b) + G * out_b

    # Double-buffered input blocks + double-buffered output block, plus headroom.
    need = 2 * (a_b + xs_b + xd_b + 2 * w_b + b_b) + 2 * out_b
    vmem_limit = min(max(int(1.5 * need) + (1 << 20), 8 << 20), 64 << 20)

    return pl.pallas_call(
        _kernel,
        out_shape=jax.ShapeDtypeStruct((G, N_pad, C_pad), jnp.float32),
        grid_spec=pltpu.PrefetchScalarGridSpec(
            num_scalar_prefetch=4,
            grid=(num_slots,),
            in_specs=[coef_spec, a_spec, xs_spec, xd_spec, w1_spec, w2_spec, b_spec],
            out_specs=out_spec,
        ),
        compiler_params=pltpu.CompilerParams(
            dimension_semantics=("arbitrary",),
            vmem_limit_bytes=vmem_limit),
        cost_estimate=pl.CostEstimate(flops=flops, transcendentals=0,
                                      bytes_accessed=bytes_accessed),
    )


# ---------------------------------------------------------------------------
# Host-side preparation: BN folding, padding, slot flattening, dense adjacency.
# ---------------------------------------------------------------------------
def _fold_bn(w, b, gamma, beta, mean, var):
    scale = gamma * jax.lax.rsqrt(var + BN_EPS)
    return w * scale[None, :], (b - mean) * scale + beta


def make_hgin_params(in_channels_dict, out_channels, node_types, edge_types, key):
    """Deterministic parameter init mirroring HGINLayer.__init__ shapes.
    BN running stats get non-trivial values so the eval-mode BN folding is exercised."""
    params = {"mlps": {}, "eps": {}}
    n = jax.random.normal
    for nt in node_types:
        key, *ks = jax.random.split(key, 13)
        cin = in_channels_dict[nt]
        params["mlps"][nt] = {
            # Linear weights stored as (in, out); PyTorch stores (out, in).
            "w1": 0.1 * n(ks[0], (cin, out_channels), jnp.float32),
            "b1": 0.1 * n(ks[1], (out_channels,), jnp.float32),
            "g1": 1.0 + 0.1 * n(ks[2], (out_channels,), jnp.float32),
            "be1": 0.1 * n(ks[3], (out_channels,), jnp.float32),
            "m1": 0.1 * n(ks[4], (out_channels,), jnp.float32),
            "v1": 1.0 + 0.1 * jnp.abs(n(ks[5], (out_channels,), jnp.float32)),
            "w2": 0.1 * n(ks[6], (out_channels, out_channels), jnp.float32),
            "b2": 0.1 * n(ks[7], (out_channels,), jnp.float32),
            "g2": 1.0 + 0.1 * n(ks[8], (out_channels,), jnp.float32),
            "be2": 0.1 * n(ks[9], (out_channels,), jnp.float32),
            "m2": 0.1 * n(ks[10], (out_channels,), jnp.float32),
            "v2": 1.0 + 0.1 * jnp.abs(n(ks[11], (out_channels,), jnp.float32)),
        }
    for et in edge_types:
        key, k = jax.random.split(key)
        # GINConv(train_eps=True) initializes eps to 0; use a small value so the
        # (1 + eps) path is exercised (as it would be after training).
        params["eps"][et] = 0.05 * jax.random.normal(k, (1,), jnp.float32)
    return params


def prepare_hgin(params, x_dict, edge_index_dict, num_nodes_dict,
                 in_channels_dict, out_channels, node_types):
    """One-time packing (hoisted out of the forward for static graphs)."""
    cins = set(in_channels_dict.values())
    # GINConv's (1+eps)*x_dst + agg requires equal channel widths across types.
    assert len(cins) == 1, "HGIN requires equal in_channels across node types"
    c_in = cins.pop()

    T = len(node_types)
    type_id = {nt: i for i, nt in enumerate(node_types)}
    C_pad = _round_up(max(c_in, out_channels), LANE)
    N_pad = _round_up(max(num_nodes_dict[nt] for nt in node_types), LANE)

    # Packed node features: f32 slab for the (1+eps)*x_dst term, bf16 copy for the
    # aggregation matmul operand (halves the xs DMA, avoids per-step in-kernel casts).
    Xf = jnp.zeros((T, N_pad, C_pad), jnp.float32)
    for nt in node_types:
        x = x_dict[nt]
        Xf = Xf.at[type_id[nt], :x.shape[0], :x.shape[1]].set(x)
    Xb = Xf.astype(jnp.bfloat16)

    # Packed, BN-folded MLP parameters per node type (weights in bf16 for the MXU).
    W1 = jnp.zeros((T, C_pad, C_pad), jnp.float32)
    W2 = jnp.zeros((T, C_pad, C_pad), jnp.float32)
    B = jnp.zeros((T, 8, C_pad), jnp.float32)
    for nt in node_types:
        p = params["mlps"][nt]
        w1f, b1f = _fold_bn(p["w1"], p["b1"], p["g1"], p["be1"], p["m1"], p["v1"])
        w2f, b2f = _fold_bn(p["w2"], p["b2"], p["g2"], p["be2"], p["m2"], p["v2"])
        i = type_id[nt]
        W1 = W1.at[i, :w1f.shape[0], :w1f.shape[1]].set(w1f)
        W2 = W2.at[i, :w2f.shape[0], :w2f.shape[1]].set(w2f)
        B = B.at[i, 0, :out_channels].set(b1f)
        B = B.at[i, 1, :out_channels].set(b2f)
    W1 = W1.astype(jnp.bfloat16)
    W2 = W2.astype(jnp.bfloat16)

    # Flat slot list: edge types ordered so those sharing a destination are contiguous.
    slots = []          # (edge_type, group_idx, first_in_group)
    group_dst = []
    for dst in node_types:
        ets = [et for et in edge_index_dict if et[2] == dst]
        if not ets:
            continue
        g = len(group_dst)
        group_dst.append(dst)
        for s, et in enumerate(ets):
            slots.append((et, g, 1 if s == 0 else 0))
    num_slots = len(slots)
    G = len(group_dst)

    A = jnp.zeros((num_slots, N_pad, N_pad), jnp.float32)
    src_sel, dst_sel, out_sel, first, coef = [], [], [], [], []
    for i, (et, g, f) in enumerate(slots):
        ei = edge_index_dict[et]
        adj = jnp.zeros((N_pad, N_pad), jnp.float32).at[ei[1], ei[0]].add(1.0)
        A = A.at[i].set(adj)
        src_sel.append(type_id[et[0]])
        dst_sel.append(type_id[et[2]])
        out_sel.append(g)
        first.append(f)
        coef.append(1.0 + float(params["eps"][et][0]))
    A = A.astype(jnp.bfloat16)                                  # exact integer counts

    packed = dict(
        src_sel=jnp.asarray(src_sel, jnp.int32),
        dst_sel=jnp.asarray(dst_sel, jnp.int32),
        out_sel=jnp.asarray(out_sel, jnp.int32),
        first=jnp.asarray(first, jnp.int32),
        coef=jnp.asarray(coef, jnp.float32),
        A=A, Xb=Xb, Xf=Xf, W1=W1, W2=W2, B=B)
    meta = dict(num_slots=num_slots, G=G, N_pad=N_pad, C_pad=C_pad,
                group_dst=group_dst, out_channels=out_channels,
                num_nodes_dict=dict(num_nodes_dict))
    return packed, meta


def hgin_forward(packed, meta):
    """HGINLayer.forward equivalent (eval mode): one fused pallas_call."""
    call = _build_fused_call(meta["num_slots"], meta["G"], meta["N_pad"], meta["C_pad"])
    out = call(packed["src_sel"], packed["dst_sel"], packed["out_sel"], packed["first"],
               packed["coef"], packed["A"], packed["Xb"], packed["Xf"],
               packed["W1"], packed["W2"], packed["B"])
    out_dict = {}
    for g, dst in enumerate(meta["group_dst"]):
        n = meta["num_nodes_dict"][dst]
        # Padded rows/cols are sliced off here; never consume the padded slab directly.
        out_dict[dst] = out[g, :n, :meta["out_channels"]]
    return out_dict


# ---------------------------------------------------------------------------
# Pure-JAX reference (un-folded BN, f32) for correctness checking.
# ---------------------------------------------------------------------------
def reference_forward(params, x_dict, edge_index_dict, num_nodes_dict):
    out_dict = {}
    for et, ei in edge_index_dict.items():
        src, _, dst = et
        p = params["mlps"][src]
        eps = params["eps"][et][0]
        agg = jnp.zeros((num_nodes_dict[dst], x_dict[src].shape[1]), jnp.float32)
        agg = agg.at[ei[1]].add(x_dict[src][ei[0]])
        h = (1.0 + eps) * x_dict[dst] + agg
        z = h @ p["w1"] + p["b1"]
        z = (z - p["m1"]) * jax.lax.rsqrt(p["v1"] + BN_EPS) * p["g1"] + p["be1"]
        z = jnp.maximum(z, 0.0)
        z = z @ p["w2"] + p["b2"]
        z = (z - p["m2"]) * jax.lax.rsqrt(p["v2"] + BN_EPS) * p["g2"] + p["be2"]
        r = jnp.maximum(z, 0.0)
        out_dict[dst] = out_dict[dst] + r if dst in out_dict else r
    return out_dict


if __name__ == "__main__":
    key = jax.random.PRNGKey(0)

    node_types = ["operation", "machine", "job"]
    num_nodes_dict = {"operation": 32, "machine": 16, "job": 8}
    in_channels_dict = {"operation": 16, "machine": 16, "job": 16}
    out_channels = 32
    num_edges = 40

    # All node-type pairs, as in HeteroMetadata's default.
    edge_types = [(s, "to", t) for s, t in itertools.product(node_types, node_types)]

    key, pkey = jax.random.split(key)
    params = make_hgin_params(in_channels_dict, out_channels, node_types, edge_types, pkey)

    # Node features.
    x_dict = {}
    for nt in node_types:
        key, k = jax.random.split(key)
        x_dict[nt] = jax.random.normal(
            k, (num_nodes_dict[nt], in_channels_dict[nt]), jnp.float32)

    # Random edge indices (2, E) per edge type, row 0 = source ids, row 1 = target ids.
    edge_index_dict = {}
    for et in edge_types:
        src, _, dst = et
        key, ks, kd = jax.random.split(key, 3)
        s_idx = jax.random.randint(ks, (num_edges,), 0, num_nodes_dict[src])
        d_idx = jax.random.randint(kd, (num_edges,), 0, num_nodes_dict[dst])
        edge_index_dict[et] = jnp.stack([s_idx, d_idx], axis=0)

    packed, meta = prepare_hgin(params, x_dict, edge_index_dict, num_nodes_dict,
                                in_channels_dict, out_channels, node_types)
    out_dict = hgin_forward(packed, meta)
    jax.block_until_ready(out_dict)

    ref_dict = reference_forward(params, x_dict, edge_index_dict, num_nodes_dict)
    for nt in node_types:
        assert out_dict[nt].shape == (num_nodes_dict[nt], out_channels)
        assert out_dict[nt].dtype == jnp.float32
        err = float(jnp.max(jnp.abs(out_dict[nt] - ref_dict[nt])))
        # bf16 MXU operands (A, x_src, W1/W2, h, z) vs f32 reference -> modest tolerance.
        assert jnp.allclose(out_dict[nt], ref_dict[nt], atol=1e-1, rtol=5e-2), (nt, err)

    print("KERNEL_OK")
</pallas_src>

<mosaic_0001>
module attributes {stable_mosaic.version = 11 : i64} {
  func.func @_kernel(%arg0: i32, %arg1: memref<9xi32, #tpu.memory_space<smem>>, %arg2: memref<9xi32, #tpu.memory_space<smem>>, %arg3: memref<9xi32, #tpu.memory_space<smem>>, %arg4: memref<9xi32, #tpu.memory_space<smem>>, %arg5: memref<9xf32, #tpu.memory_space<smem>>, %arg6: memref<1x128x128xbf16, #tpu.memory_space<vmem>>, %arg7: memref<1x128x128xbf16, #tpu.memory_space<vmem>>, %arg8: memref<1x128x128xf32, #tpu.memory_space<vmem>>, %arg9: memref<1x128x128xbf16, #tpu.memory_space<vmem>>, %arg10: memref<1x128x128xbf16, #tpu.memory_space<vmem>>, %arg11: memref<1x8x128xf32, #tpu.memory_space<vmem>>, %arg12: memref<1x128x128xf32, #tpu.memory_space<vmem>>) attributes {dimension_semantics = [#tpu.dimension_semantics<arbitrary>], iteration_bounds = array<i64: 9>, scalar_prefetch = 4 : i64, scratch_operands = 0 : i64, tpu.core_type = #tpu.core_type<tc>, window_params = [{transform_indices = @transform_0, window_bounds = array<i64: 9>}, {transform_indices = @transform_1, window_bounds = array<i64: 1, 128, 128>}, {transform_indices = @transform_2, window_bounds = array<i64: 1, 128, 128>}, {transform_indices = @transform_3, window_bounds = array<i64: 1, 128, 128>}, {transform_indices = @transform_4, window_bounds = array<i64: 1, 128, 128>}, {transform_indices = @transform_5, window_bounds = array<i64: 1, 128, 128>}, {transform_indices = @transform_6, window_bounds = array<i64: 1, 8, 128>}, {transform_indices = @transform_7, window_bounds = array<i64: 1, 128, 128>}]} {
    %c0 = arith.constant 0 : index
    %c0_0 = arith.constant 0 : index
    %c0_1 = arith.constant 0 : index
    %0 = vector.load %arg6[%c0, %c0_0, %c0_1] : memref<1x128x128xbf16, #tpu.memory_space<vmem>>, vector<1x128x128xbf16>
    %1 = vector.shape_cast %0 : vector<1x128x128xbf16> to vector<128x128xbf16>
    %c0_2 = arith.constant 0 : index
    %c0_3 = arith.constant 0 : index
    %c0_4 = arith.constant 0 : index
    %2 = vector.load %arg7[%c0_2, %c0_3, %c0_4] : memref<1x128x128xbf16, #tpu.memory_space<vmem>>, vector<1x128x128xbf16>
    %3 = vector.shape_cast %2 : vector<1x128x128xbf16> to vector<128x128xbf16>
    %cst = arith.constant dense<0.000000e+00> : vector<128x128xf32>
    %4 = tpu.matmul %1, %3, %cst {dimension_numbers = #tpu.dot_dimension_numbers<[1], [0], [0], [1], [0, 0, 1, 1], [], []>} : vector<128x128xbf16>, vector<128x128xbf16>, vector<128x128xf32> -> vector<128x128xf32>
    %5 = arith.index_cast %arg0 : i32 to index
    %6 = memref.load %arg5[%5] : memref<9xf32, #tpu.memory_space<smem>>
    %c0_5 = arith.constant 0 : index
    %c0_6 = arith.constant 0 : index
    %c0_7 = arith.constant 0 : index
    %7 = vector.load %arg8[%c0_5, %c0_6, %c0_7] : memref<1x128x128xf32, #tpu.memory_space<vmem>>, vector<1x128x128xf32>
    %8 = vector.shape_cast %7 : vector<1x128x128xf32> to vector<128x128xf32>
    %9 = vector.broadcast %6 : f32 to vector<128x128xf32>
    %10 = arith.mulf %9, %8 : vector<128x128xf32>
    %11 = arith.addf %10, %4 : vector<128x128xf32>
    %12 = arith.truncf %11 : vector<128x128xf32> to vector<128x128xbf16>
    %c0_8 = arith.constant 0 : index
    %c0_9 = arith.constant 0 : index
    %c0_10 = arith.constant 0 : index
    %13 = vector.load %arg9[%c0_8, %c0_9, %c0_10] : memref<1x128x128xbf16, #tpu.memory_space<vmem>>, vector<1x128x128xbf16>
    %14 = vector.shape_cast %13 : vector<1x128x128xbf16> to vector<128x128xbf16>
    %cst_11 = arith.constant dense<0.000000e+00> : vector<128x128xf32>
    %15 = tpu.matmul %12, %14, %cst_11 {dimension_numbers = #tpu.dot_dimension_numbers<[1], [0], [0], [1], [0, 0, 1, 1], [], []>} : vector<128x128xbf16>, vector<128x128xbf16>, vector<128x128xf32> -> vector<128x128xf32>
    %c0_12 = arith.constant 0 : index
    %c0_13 = arith.constant 0 : index
    %c0_14 = arith.constant 0 : index
    %16 = vector.load %arg11[%c0_12, %c0_13, %c0_14] : memref<1x8x128xf32, #tpu.memory_space<vmem>>, vector<1x1x128xf32>
    %17 = vector.shape_cast %16 : vector<1x1x128xf32> to vector<1x128xf32>
    %18 = vector.broadcast %17 : vector<1x128xf32> to vector<128x128xf32>
    %19 = arith.addf %15, %18 : vector<128x128xf32>
    %cst_15 = arith.constant 0.000000e+00 : f32
    %20 = vector.broadcast %cst_15 : f32 to vector<128x128xf32>
    %21 = arith.maximumf %19, %20 : vector<128x128xf32>
    %22 = arith.truncf %21 : vector<128x128xf32> to vector<128x128xbf16>
    %c0_16 = arith.constant 0 : index
    %c0_17 = arith.constant 0 : index
    %c0_18 = arith.constant 0 : index
    %23 = vector.load %arg10[%c0_16, %c0_17, %c0_18] : memref<1x128x128xbf16, #tpu.memory_space<vmem>>, vector<1x128x128xbf16>
    %24 = vector.shape_cast %23 : vector<1x128x128xbf16> to vector<128x128xbf16>
    %cst_19 = arith.constant dense<0.000000e+00> : vector<128x128xf32>
    %25 = tpu.matmul %22, %24, %cst_19 {dimension_numbers = #tpu.dot_dimension_numbers<[1], [0], [0], [1], [0, 0, 1, 1], [], []>} : vector<128x128xbf16>, vector<128x128xbf16>, vector<128x128xf32> -> vector<128x128xf32>
    %c0_20 = arith.constant 0 : index
    %c1 = arith.constant 1 : index
    %c0_21 = arith.constant 0 : index
    %26 = vector.load %arg11[%c0_20, %c1, %c0_21] : memref<1x8x128xf32, #tpu.memory_space<vmem>>, vector<1x1x128xf32>
    %27 = vector.shape_cast %26 : vector<1x1x128xf32> to vector<1x128xf32>
    %28 = vector.broadcast %27 : vector<1x128xf32> to vector<128x128xf32>
    %29 = arith.addf %25, %28 : vector<128x128xf32>
    %cst_22 = arith.constant 0.000000e+00 : f32
    %30 = vector.broadcast %cst_22 : f32 to vector<128x128xf32>
    %31 = arith.maximumf %29, %30 : vector<128x128xf32>
    %32 = arith.index_cast %arg0 : i32 to index
    %33 = memref.load %arg4[%32] : memref<9xi32, #tpu.memory_space<smem>>
    %c1_i32 = arith.constant 1 : i32
    %34 = arith.cmpi eq, %33, %c1_i32 : i32
    %35 = arith.extui %34 : i1 to i32
    %c0_i32 = arith.constant 0 : i32
    %36 = arith.cmpi ne, %35, %c0_i32 : i32
    scf.if %36 {
      %c0_25 = arith.constant 0 : index
      %c0_26 = arith.constant 0 : index
      %c0_27 = arith.constant 0 : index
      %42 = vector.load %arg12[%c0_25, %c0_26, %c0_27] : memref<1x128x128xf32, #tpu.memory_space<vmem>>, vector<1x128x128xf32>
      %43 = vector.shape_cast %42 : vector<1x128x128xf32> to vector<128x128xf32>
      %44 = vector.shape_cast %31 : vector<128x128xf32> to vector<1x128x128xf32>
      tpu.vector_store %arg12[%c0_25, %c0_26, %c0_27], %44 {strides = array<i32>} : memref<1x128x128xf32, #tpu.memory_space<vmem>>, vector<1x128x128xf32>,
    } else {
    }
    %37 = arith.index_cast %arg0 : i32 to index
    %38 = memref.load %arg4[%37] : memref<9xi32, #tpu.memory_space<smem>>
    %c0_i32_23 = arith.constant 0 : i32
    %39 = arith.cmpi eq, %38, %c0_i32_23 : i32
    %40 = arith.extui %39 : i1 to i32
    %c0_i32_24 = arith.constant 0 : i32
    %41 = arith.cmpi ne, %40, %c0_i32_24 : i32
    scf.if %41 {
      %c0_25 = arith.constant 0 : index
      %c0_26 = arith.constant 0 : index
      %c0_27 = arith.constant 0 : index
      %42 = vector.load %arg12[%c0_25, %c0_26, %c0_27] : memref<1x128x128xf32, #tpu.memory_space<vmem>>, vector<1x128x128xf32>
      %43 = vector.shape_cast %42 : vector<1x128x128xf32> to vector<128x128xf32>
      %44 = arith.addf %43, %31 : vector<128x128xf32>
      %c0_28 = arith.constant 0 : index
      %c0_29 = arith.constant 0 : index
      %c0_30 = arith.constant 0 : index
      %45 = vector.load %arg12[%c0_28, %c0_29, %c0_30] : memref<1x128x128xf32, #tpu.memory_space<vmem>>, vector<1x128x128xf32>
      %46 = vector.shape_cast %45 : vector<1x128x128xf32> to vector<128x128xf32>
      %47 = vector.shape_cast %44 : vector<128x128xf32> to vector<1x128x128xf32>
      tpu.vector_store %arg12[%c0_28, %c0_29, %c0_30], %47 {strides = array<i32>} : memref<1x128x128xf32, #tpu.memory_space<vmem>>, vector<1x128x128xf32>,
    } else {
    }
    return
  }
  func.func @transform_0(%arg0: i32, %arg1: memref<9xi32, #tpu.memory_space<smem>>, %arg2: memref<9xi32, #tpu.memory_space<smem>>, %arg3: memref<9xi32, #tpu.memory_space<smem>>, %arg4: memref<9xi32, #tpu.memory_space<smem>>) -> i32 {
    %c0_i32 = arith.constant 0 : i32
    %c0_i32_0 = arith.constant 0 : i32
    return %c0_i32 : i32
  }
  func.func @transform_1(%arg0: i32, %arg1: memref<9xi32, #tpu.memory_space<smem>>, %arg2: memref<9xi32, #tpu.memory_space<smem>>, %arg3: memref<9xi32, #tpu.memory_space<smem>>, %arg4: memref<9xi32, #tpu.memory_space<smem>>) -> (i32, i32, i32) {
    %c0_i32 = arith.constant 0 : i32
    %c0_i32_0 = arith.constant 0 : i32
    %c0_i32_1 = arith.constant 0 : i32
    return %arg0, %c0_i32, %c0_i32_0 : i32, i32, i32
  }
  func.func @transform_2(%arg0: i32, %arg1: memref<9xi32, #tpu.memory_space<smem>>, %arg2: memref<9xi32, #tpu.memory_space<smem>>, %arg3: memref<9xi32, #tpu.memory_space<smem>>, %arg4: memref<9xi32, #tpu.memory_space<smem>>) -> (i32, i32, i32) {
    %0 = arith.index_cast %arg0 : i32 to index
    %1 = memref.load %arg1[%0] : memref<9xi32, #tpu.memory_space<smem>>
    %c0_i32 = arith.constant 0 : i32
    %c0_i32_0 = arith.constant 0 : i32
    %c0_i32_1 = arith.constant 0 : i32
    return %1, %c0_i32, %c0_i32_0 : i32, i32, i32
  }
  func.func @transform_3(%arg0: i32, %arg1: memref<9xi32, #tpu.memory_space<smem>>, %arg2: memref<9xi32, #tpu.memory_space<smem>>, %arg3: memref<9xi32, #tpu.memory_space<smem>>, %arg4: memref<9xi32, #tpu.memory_space<smem>>) -> (i32, i32, i32) {
    %0 = arith.index_cast %arg0 : i32 to index
    %1 = memref.load %arg2[%0] : memref<9xi32, #tpu.memory_space<smem>>
    %c0_i32 = arith.constant 0 : i32
    %c0_i32_0 = arith.constant 0 : i32
    %c0_i32_1 = arith.constant 0 : i32
    return %1, %c0_i32, %c0_i32_0 : i32, i32, i32
  }
  func.func @transform_4(%arg0: i32, %arg1: memref<9xi32, #tpu.memory_space<smem>>, %arg2: memref<9xi32, #tpu.memory_space<smem>>, %arg3: memref<9xi32, #tpu.memory_space<smem>>, %arg4: memref<9xi32, #tpu.memory_space<smem>>) -> (i32, i32, i32) {
    %0 = arith.index_cast %arg0 : i32 to index
    %1 = memref.load %arg1[%0] : memref<9xi32, #tpu.memory_space<smem>>
    %c0_i32 = arith.constant 0 : i32
    %c0_i32_0 = arith.constant 0 : i32
    %c0_i32_1 = arith.constant 0 : i32
    return %1, %c0_i32, %c0_i32_0 : i32, i32, i32
  }
  func.func @transform_5(%arg0: i32, %arg1: memref<9xi32, #tpu.memory_space<smem>>, %arg2: memref<9xi32, #tpu.memory_space<smem>>, %arg3: memref<9xi32, #tpu.memory_space<smem>>, %arg4: memref<9xi32, #tpu.memory_space<smem>>) -> (i32, i32, i32) {
    %0 = arith.index_cast %arg0 : i32 to index
    %1 = memref.load %arg1[%0] : memref<9xi32, #tpu.memory_space<smem>>
    %c0_i32 = arith.constant 0 : i32
    %c0_i32_0 = arith.constant 0 : i32
    %c0_i32_1 = arith.constant 0 : i32
    return %1, %c0_i32, %c0_i32_0 : i32, i32, i32
  }
  func.func @transform_6(%arg0: i32, %arg1: memref<9xi32, #tpu.memory_space<smem>>, %arg2: memref<9xi32, #tpu.memory_space<smem>>, %arg3: memref<9xi32, #tpu.memory_space<smem>>, %arg4: memref<9xi32, #tpu.memory_space<smem>>) -> (i32, i32, i32) {
    %0 = arith.index_cast %arg0 : i32 to index
    %1 = memref.load %arg1[%0] : memref<9xi32, #tpu.memory_space<smem>>
    %c0_i32 = arith.constant 0 : i32
    %c0_i32_0 = arith.constant 0 : i32
    %c0_i32_1 = arith.constant 0 : i32
    return %1, %c0_i32, %c0_i32_0 : i32, i32, i32
  }
  func.func @transform_7(%arg0: i32, %arg1: memref<9xi32, #tpu.memory_space<smem>>, %arg2: memref<9xi32, #tpu.memory_space<smem>>, %arg3: memref<9xi32, #tpu.memory_space<smem>>, %arg4: memref<9xi32, #tpu.memory_space<smem>>) -> (i32, i32, i32) {
    %0 = arith.index_cast %arg0 : i32 to index
    %1 = memref.load %arg3[%0] : memref<9xi32, #tpu.memory_space<smem>>
    %c0_i32 = arith.constant 0 : i32
    %c0_i32_0 = arith.constant 0 : i32
    %c0_i32_1 = arith.constant 0 : i32
    return %1, %c0_i32, %c0_i32_0 : i32, i32, i32
  }
}

</mosaic_0001>

<llo_original>
// kernel: tpu_custom_call.1
$region0: #{tpu_custom_call.1}
  #allocation0 [shape = 'u32[]', space=smem, size = 0x4, offset = 0x4, fixed_abs, tag = 'smem constant byte address 0x4 - core index']
  #allocation1 [shape = 'u32[144,128]{1,0:T(1,128)}', space=vmem, size = 0x12000, scoped, tag = 'internal scratch']
  #allocation2 [shape = 's32[1]{0}', space=sflag, size = 0x4, scoped, tag = 'scoped memory for tpu_custom_call.1']
  #allocation3 [shape = 'u8[512]{0}', space=smem, size = 0x200, scoped, tag = 'prefetched SMEM operand 0']
  #allocation4 [shape = 'u8[512]{0}', space=smem, size = 0x200, scoped, tag = 'prefetched SMEM operand 1']
  #allocation5 [shape = 'u8[512]{0}', space=smem, size = 0x200, scoped, tag = 'prefetched SMEM operand 2']
  #allocation6 [shape = 'u8[512]{0}', space=smem, size = 0x200, scoped, tag = 'prefetched SMEM operand 3']
  %s0 = inlined_call_operand.hbm [shape: s32[9], index: 0, kind: input, shape index: {}]
  %s1 = inlined_call_operand.vmem [shape: s32[9], index: 1, kind: input, shape index: {}]
  %s2 = inlined_call_operand.vmem [shape: s32[9], index: 2, kind: input, shape index: {}]
  %s3 = inlined_call_operand.vmem [shape: s32[9], index: 3, kind: input, shape index: {}]
  %s4 = inlined_call_operand.vmem [shape: f32[9], index: 4, kind: input, shape index: {}]
  %s5 = inlined_call_operand.hbm [shape: bf16[9,128,128], index: 5, kind: input, shape index: {}]
  %s6 = inlined_call_operand.hbm [shape: bf16[3,128,128], index: 6, kind: input, shape index: {}]
  %s7 = inlined_call_operand.hbm [shape: f32[3,128,128], index: 7, kind: input, shape index: {}]
  %s8 = inlined_call_operand.hbm [shape: bf16[3,128,128], index: 8, kind: input, shape index: {}]
  %s9 = inlined_call_operand.hbm [shape: bf16[3,128,128], index: 9, kind: input, shape index: {}]
  %s10 = inlined_call_operand.hbm [shape: f32[3,8,128], index: 10, kind: input, shape index: {}]
  %s11 = inlined_call_operand.hbm [shape: f32[3,128,128], index: 11, kind: output, shape index: {}]
  %s12 = sld [smem:[#allocation0]]
  $region97: #{tpu_custom_call.1} parent=0
    _
  %s14 = ssub.s32 1, %s12
  %s15 = scalar_select 0, %s14, %s12
  %17 = dma.hbm_to_smem %s0, 16, [#allocation3], [#allocation2]
  %s18 = sshll.u32 %s1, 4
  %s19 = int_to_ptr.vmem [resolvable:$true] %s18
  %21 = dma.vmem_to_smem %s19, 16, [#allocation4], [#allocation2]
  %s22 = sshll.u32 %s2, 4
  %s23 = int_to_ptr.vmem [resolvable:$true] %s22
  %25 = dma.vmem_to_smem %s23, 16, [#allocation5], [#allocation2]
  %s26 = sshll.u32 %s3, 4
  %s27 = int_to_ptr.vmem [resolvable:$true] %s26
  %29 = dma.vmem_to_smem %s27, 16, [#allocation6], [#allocation2]
  %30 = dma.done [#allocation2], 64
  %31 = sfence
  $region1: #{tpu_custom_call.1} parent=0
    #allocation7 [shape = 'u8[512]{0}', space=smem, size = 0x200, scoped, tag = 'input window, operand 4, single buffered']
    #allocation8 [shape = 's32[2]{0}', space=sflag, size = 0x8, scoped, tag = 'scoped memory for tpu_custom_call.1']
    #allocation9 [shape = 's32[2]{0}', space=sflag, size = 0x8, scoped, tag = 'scoped memory for tpu_custom_call.1']
    #allocation10 [shape = 's32[2]{0}', space=sflag, size = 0x8, scoped, tag = 'scoped memory for tpu_custom_call.1']
    #allocation11 [shape = 'u8[65536]{0}', space=vmem, size = 0x10000, scoped, tag = 'input window, operand 5']
    #allocation12 [shape = 'u8[65536]{0}', space=vmem, size = 0x10000, scoped, tag = 'input window, operand 6']
    #allocation13 [shape = 's32[2]{0}', space=sflag, size = 0x8, scoped, tag = 'scoped memory for tpu_custom_call.1']
    #allocation14 [shape = 'u8[131072]{0}', space=vmem, size = 0x20000, scoped, tag = 'input window, operand 7']
    #allocation15 [shape = 'u8[65536]{0}', space=vmem, size = 0x10000, scoped, tag = 'input window, operand 8']
    #allocation16 [shape = 's32[2]{0}', space=sflag, size = 0x8, scoped, tag = 'scoped memory for tpu_custom_call.1']
    #allocation17 [shape = 'u8[65536]{0}', space=vmem, size = 0x10000, scoped, tag = 'input window, operand 9']
    #allocation18 [shape = 'u8[8192]{0}', space=vmem, size = 0x2000, scoped, tag = 'input window, operand 10']
    #allocation19 [shape = 's32[2]{0}', space=sflag, size = 0x8, scoped, tag = 'scoped memory for tpu_custom_call.1']
    #allocation20 [shape = 'u8[131072]{0}', space=vmem, size = 0x20000, scoped, tag = 'output window, operand 0']
    %32 = vsyncpa [#allocation10], 0
    %33 = vsyncpa [#allocation8], 0
    %s34 = scalar_lea.sflag [#allocation8], 1
    %35 = vsyncpa %s34, 0
    %36 = vsyncpa [#allocation13], 0
    %s37 = scalar_lea.sflag [#allocation13], 1
    %38 = vsyncpa %s37, 0
    %39 = vsyncpa [#allocation16], 0
    %s40 = scalar_lea.sflag [#allocation16], 1
    %41 = vsyncpa %s40, 0
    %42 = vsyncpa [#allocation19], 0
    %s43 = scalar_lea.sflag [#allocation19], 1
    %44 = vsyncpa %s43, 0
    %45 = vsyncpa [#allocation9], 0
    %s46 = scalar_lea.sflag [#allocation9], 1
    %47 = vsyncpa %s46, 0
    loop: start=0, step=1, limit=11
    $region2: #{tpu_custom_call.1} parent=1 // loop_pre_header
      _
    $region3: #{tpu_custom_call.1} parent=1 // loop_header
      %s49 = sphi 0, %s53
      %p50 = scmp.ge.s32.totalorder %s49, 11
      %s57 = sphi 0, %s57
      %s59 = sphi 0, %s57
      %s60 = sphi 0, %s59
      %s74 = sphi 0, %s60
      %s80 = sphi 0, %s82
      %s83 = sphi 0, %s80
      %s84 = sphi 0, %s83
      %s100 = sphi 0, %s84
      %s108 = sphi 0, %s110
      %s111 = sphi 0, %s108
      %s112 = sphi 0, %s111
      %s128 = sphi 0, %s112
      %s136 = sphi 0, %s138
      %s139 = sphi 0, %s136
      %s140 = sphi 0, %s139
      %s156 = sphi 0, %s140
      %s164 = sphi 0, %s166
      %s167 = sphi 0, %s164
      %s168 = sphi 0, %s167
      %s184 = sphi 0, %s168
      %s192 = sphi 0, %s194
      %s195 = sphi 0, %s192
      %s196 = sphi 0, %s195
      %s212 = sphi 0, %s196
      %s220 = sphi 0, %s222
      %s223 = sphi 0, %s220
      %s224 = sphi 0, %s223
      %s240 = sphi 0, %s224
      %s248 = sphi 0, %s250
      %s251 = sphi 0, %s248
      %s252 = sphi 0, %s251
      %s268 = sphi 0, %s252
    $region4: #{tpu_custom_call.1} parent=1 // loop_header_branch
      %52 = sbr.rel (%p50) target = $region8
    $region5: #{tpu_custom_call.1} parent=1 // loop_body
      %s54 = ssub.s32 %s49, 1
      %s55 = ssub.s32 %s49, 2
      %s56 = sadd.s32 %s49, 1
      %s58 = sadd.s32 %s57, 1
      %p61 = scmp.eq.s32.totalorder %s49, 8
      %p62 = scmp.ne.s32.totalorder %s57, %s59
      %p63 = scmp.eq.s32.totalorder %s49, 0
      %p64 = por %p62, %p63
      %p65 = scmp.ne.s32.totalorder %s57, %s59
      %p66 = scmp.eq.s32.totalorder %s54, 8
      %p67 = por %p65, %p66
      %p68 = scmp.ne.s32.totalorder %s59, %s60
      %p69 = scmp.eq.s32.totalorder %s54, 0
      %p70 = por %p68, %p69
      %p71 = scmp.ne.s32.totalorder %s59, %s60
      %p72 = scmp.eq.s32.totalorder %s55, 8
      %p73 = por %p71, %p72
      %p75 = scmp.ne.s32.totalorder %s60, %s74
      %p76 = scmp.eq.s32.totalorder %s55, 0
      %p77 = por %p75, %p76
      %s78 = ssub.s32 %s49, %s56
      %p79 = scmp.eq.s32.totalorder %s78, 0
      %s81 = sadd.s32 %s80, 1
      %s82 = scalar_select %p79, %s80, %s81
      %p85 = pneg %p79
      %p86 = scmp.eq.s32.totalorder %s49, 8
      %p87 = por %p85, %p86
      %p88 = scmp.ne.s32.totalorder %s80, %s83
      %p89 = scmp.eq.s32.totalorder %s49, 0
      %p90 = por %p88, %p89
      %p91 = scmp.ne.s32.totalorder %s80, %s83
      %p92 = scmp.eq.s32.totalorder %s54, 8
      %p93 = por %p91, %p92
      %p94 = scmp.ne.s32.totalorder %s83, %s84
      %p95 = scmp.eq.s32.totalorder %s54, 0
      %p96 = por %p94, %p95
      %p97 = scmp.ne.s32.totalorder %s83, %s84
      %p98 = scmp.eq.s32.totalorder %s55, 8
      %p99 = por %p97, %p98
      %p101 = scmp.ne.s32.totalorder %s84, %s100
      %p102 = scmp.eq.s32.totalorder %s55, 0
      %p103 = por %p101, %p102
      %s104 = sld [smem:[#allocation3 + %s49]]
      %s105 = sld [smem:[#allocation3 + %s56]]
      %s106 = ssub.s32 %s104, %s105
      %p107 = scmp.eq.s32.totalorder %s106, 0
      %s109 = sadd.s32 %s108, 1
      %s110 = scalar_select %p107, %s108, %s109
      %p113 = pneg %p107
      %p114 = scmp.eq.s32.totalorder %s49, 8
      %p115 = por %p113, %p114
      %p116 = scmp.ne.s32.totalorder %s108, %s111
      %p117 = scmp.eq.s32.totalorder %s49, 0
      %p118 = por %p116, %p117
      %p119 = scmp.ne.s32.totalorder %s108, %s111
      %p120 = scmp.eq.s32.totalorder %s54, 8
      %p121 = por %p119, %p120
      %p122 = scmp.ne.s32.totalorder %s111, %s112
      %p123 = scmp.eq.s32.totalorder %s54, 0
      %p124 = por %p122, %p123
      %p125 = scmp.ne.s32.totalorder %s111, %s112
      %p126 = scmp.eq.s32.totalorder %s55, 8
      %p127 = por %p125, %p126
      %p129 = scmp.ne.s32.totalorder %s112, %s128
      %p130 = scmp.eq.s32.totalorder %s55, 0
      %p131 = por %p129, %p130
      %s132 = sld [smem:[#allocation4 + %s49]]
      %s133 = sld [smem:[#allocation4 + %s56]]
      %s134 = ssub.s32 %s132, %s133
      %p135 = scmp.eq.s32.totalorder %s134, 0
      %s137 = sadd.s32 %s136, 1
      %s138 = scalar_select %p135, %s136, %s137
      %p141 = pneg %p135
      %p142 = scmp.eq.s32.totalorder %s49, 8
      %p143 = por %p141, %p142
      %p144 = scmp.ne.s32.totalorder %s136, %s139
      %p145 = scmp.eq.s32.totalorder %s49, 0
      %p146 = por %p144, %p145
      %p147 = scmp.ne.s32.totalorder %s136, %s139
      %p148 = scmp.eq.s32.totalorder %s54, 8
      %p149 = por %p147, %p148
      %p150 = scmp.ne.s32.totalorder %s139, %s140
      %p151 = scmp.eq.s32.totalorder %s54, 0
      %p152 = por %p150, %p151
      %p153 = scmp.ne.s32.totalorder %s139, %s140
      %p154 = scmp.eq.s32.totalorder %s55, 8
      %p155 = por %p153, %p154
      %p157 = scmp.ne.s32.totalorder %s140, %s156
      %p158 = scmp.eq.s32.totalorder %s55, 0
      %p159 = por %p157, %p158
      %s160 = sld [smem:[#allocation3 + %s49]]
      %s161 = sld [smem:[#allocation3 + %s56]]
      %s162 = ssub.s32 %s160, %s161
      %p163 = scmp.eq.s32.totalorder %s162, 0
      %s165 = sadd.s32 %s164, 1
      %s166 = scalar_select %p163, %s164, %s165
      %p169 = pneg %p163
      %p170 = scmp.eq.s32.totalorder %s49, 8
      %p171 = por %p169, %p170
      %p172 = scmp.ne.s32.totalorder %s164, %s167
      %p173 = scmp.eq.s32.totalorder %s49, 0
      %p174 = por %p172, %p173
      %p175 = scmp.ne.s32.totalorder %s164, %s167
      %p176 = scmp.eq.s32.totalorder %s54, 8
      %p177 = por %p175, %p176
      %p178 = scmp.ne.s32.totalorder %s167, %s168
      %p179 = scmp.eq.s32.totalorder %s54, 0
      %p180 = por %p178, %p179
      %p181 = scmp.ne.s32.totalorder %s167, %s168
      %p182 = scmp.eq.s32.totalorder %s55, 8
      %p183 = por %p181, %p182
      %p185 = scmp.ne.s32.totalorder %s168, %s184
      %p186 = scmp.eq.s32.totalorder %s55, 0
      %p187 = por %p185, %p186
      %s188 = sld [smem:[#allocation3 + %s49]]
      %s189 = sld [smem:[#allocation3 + %s56]]
      %s190 = ssub.s32 %s188, %s189
      %p191 = scmp.eq.s32.totalorder %s190, 0
      %s193 = sadd.s32 %s192, 1
      %s194 = scalar_select %p191, %s192, %s193
      %p197 = pneg %p191
      %p198 = scmp.eq.s32.totalorder %s49, 8
      %p199 = por %p197, %p198
      %p200 = scmp.ne.s32.totalorder %s192, %s195
      %p201 = scmp.eq.s32.totalorder %s49, 0
      %p202 = por %p200, %p201
      %p203 = scmp.ne.s32.totalorder %s192, %s195
      %p204 = scmp.eq.s32.totalorder %s54, 8
      %p205 = por %p203, %p204
      %p206 = scmp.ne.s32.totalorder %s195, %s196
      %p207 = scmp.eq.s32.totalorder %s54, 0
      %p208 = por %p206, %p207
      %p209 = scmp.ne.s32.totalorder %s195, %s196
      %p210 = scmp.eq.s32.totalorder %s55, 8
      %p211 = por %p209, %p210
      %p213 = scmp.ne.s32.totalorder %s196, %s212
      %p214 = scmp.eq.s32.totalorder %s55, 0
      %p215 = por %p213, %p214
      %s216 = sld [smem:[#allocation3 + %s49]]
      %s217 = sld [smem:[#allocation3 + %s56]]
      %s218 = ssub.s32 %s216, %s217
      %p219 = scmp.eq.s32.totalorder %s218, 0
      %s221 = sadd.s32 %s220, 1
      %s222 = scalar_select %p219, %s220, %s221
      %p225 = pneg %p219
      %p226 = scmp.eq.s32.totalorder %s49, 8
      %p227 = por %p225, %p226
      %p228 = scmp.ne.s32.totalorder %s220, %s223
      %p229 = scmp.eq.s32.totalorder %s49, 0
      %p230 = por %p228, %p229
      %p231 = scmp.ne.s32.totalorder %s220, %s223
      %p232 = scmp.eq.s32.totalorder %s54, 8
      %p233 = por %p231, %p232
      %p234 = scmp.ne.s32.totalorder %s223, %s224
      %p235 = scmp.eq.s32.totalorder %s54, 0
      %p236 = por %p234, %p235
      %p237 = scmp.ne.s32.totalorder %s223, %s224
      %p238 = scmp.eq.s32.totalorder %s55, 8
      %p239 = por %p237, %p238
      %p241 = scmp.ne.s32.totalorder %s224, %s240
      %p242 = scmp.eq.s32.totalorder %s55, 0
      %p243 = por %p241, %p242
      %s244 = sld [smem:[#allocation5 + %s49]]
      %s245 = sld [smem:[#allocation5 + %s56]]
      %s246 = ssub.s32 %s244, %s245
      %p247 = scmp.eq.s32.totalorder %s246, 0
      %s249 = sadd.s32 %s248, 1
      %s250 = scalar_select %p247, %s248, %s249
      %p253 = pneg %p247
      %p254 = scmp.eq.s32.totalorder %s49, 8
      %p255 = por %p253, %p254
      %p256 = scmp.ne.s32.totalorder %s248, %s251
      %p257 = scmp.eq.s32.totalorder %s49, 0
      %p258 = por %p256, %p257
      %p259 = scmp.ne.s32.totalorder %s248, %s251
      %p260 = scmp.eq.s32.totalorder %s54, 8
      %p261 = por %p259, %p260
      %p262 = scmp.ne.s32.totalorder %s251, %s252
      %p263 = scmp.eq.s32.totalorder %s54, 0
      %p264 = por %p262, %p263
      %p265 = scmp.ne.s32.totalorder %s251, %s252
      %p266 = scmp.eq.s32.totalorder %s55, 8
      %p267 = por %p265, %p266
      %p269 = scmp.ne.s32.totalorder %s252, %s268
      %p270 = scmp.eq.s32.totalorder %s55, 0
      %p271 = por %p269, %p270
      %p272 = scmp.le.s32.totalorder 1, %s49
      %p273 = scmp.lt.s32.totalorder %s49, 10
      %p274 = pnand %p272, %p273
      %p275 = pneg %p274
      // Predicated region
      $region9: #{tpu_custom_call.1} parent=5 // pred_check
        _
      $region10: #{tpu_custom_call.1} parent=5 // pred_check_branch
        %277 = sbr.rel (%p274) target = $region12
      $region11: #{tpu_custom_call.1} parent=5 // pred_region
        %s278 = ssub.s32 %s49, 1
        // Predicated region
        $region13: #{tpu_custom_call.1} parent=11 // pred_check
          %p279 = pneg %p70
        $region14: #{tpu_custom_call.1} parent=11 // pred_check_branch
          %281 = sbr.rel (%p279) target = $region16
        $region15: #{tpu_custom_call.1} parent=11 // pred_region
          %s283 = ssub.s32 16, 16
          %284 = vsyncadd [#allocation10], %s283
          %s286 = sshll.u32 %s4, 4
          %s287 = int_to_ptr.vmem [resolvable:$true] %s286
          %289 = dma.vmem_to_smem %s287, 16, [#allocation7], [#allocation10]
        $region16: #{tpu_custom_call.1} parent=11 // pred_fallthru
          _
      $region12: #{tpu_custom_call.1} parent=5 // pred_fallthru
        _
      %p290 = scmp.lt.s32.totalorder %s49, 9
      // Predicated region
      $region17: #{tpu_custom_call.1} parent=5 // pred_check
        %p291 = pneg %p290
      $region18: #{tpu_custom_call.1} parent=5 // pred_check_branch
        %293 = sbr.rel (%p291) target = $region20
      $region19: #{tpu_custom_call.1} parent=5 // pred_region
        // Predicated region
        $region21: #{tpu_custom_call.1} parent=19 // pred_check
          %p294 = pneg %p90
        $region22: #{tpu_custom_call.1} parent=19 // pred_check_branch
          %296 = sbr.rel (%p294) target = $region24
        $region23: #{tpu_custom_call.1} parent=19 // pred_region
          %s297 = sand.u32 %s80, 1
          %s298 = scalar_lea.sflag [#allocation8], %s297
          %s299 = sand.u32 %s80, 1
          %s300 = smul.addr %s299, 64
          %s301 = scalar_lea.vmem [#allocation11], %s300
          %s303 = ssub.s32 1024, 1024
          %304 = vsyncadd %s298, %s303
          %s305 = smul.addr %s49, 16
          %s306 = smul.addr %s305, 64
          %s307 = scalar_lea.hbm %s5, %s306
          %s308 = sshll.u32 %s301, 4
          %s309 = int_to_ptr.vmem [resolvable:$true] %s308
          %314 = dma.hbm_to_vmem [thread:$0]  %s307, 1024, %s309, %s298, 64, 64, 4
        $region24: #{tpu_custom_call.1} parent=19 // pred_fallthru
          _
        // Predicated region
        $region25: #{tpu_custom_call.1} parent=19 // pred_check
          %p315 = pneg %p118
        $region26: #{tpu_custom_call.1} parent=19 // pred_check_branch
          %317 = sbr.rel (%p315) target = $region28
        $region27: #{tpu_custom_call.1} parent=19 // pred_region
          %s318 = sand.u32 %s49, 1
          %s319 = scalar_lea.sflag [#allocation13], %s318
          %s320 = sand.u32 %s108, 1
          %s321 = smul.addr %s320, 64
          %s322 = scalar_lea.vmem [#allocation12], %s321
          %s323 = sld [smem:[#allocation3 + %s49]]
          %s325 = ssub.s32 1024, 1024
          %326 = vsyncadd %s319, %s325
          %s327 = smul.addr %s323, 16
          %s328 = smul.addr %s327, 64
          %s329 = scalar_lea.hbm %s6, %s328
          %s330 = sshll.u32 %s322, 4
          %s331 = int_to_ptr.vmem [resolvable:$true] %s330
          %336 = dma.hbm_to_vmem [thread:$0]  %s329, 1024, %s331, %s319, 64, 64, 4
        $region28: #{tpu_custom_call.1} parent=19 // pred_fallthru
          _
        // Predicated region
        $region29: #{tpu_custom_call.1} parent=19 // pred_check
          %p337 = pneg %p146
        $region30: #{tpu_custom_call.1} parent=19 // pred_check_branch
          %339 = sbr.rel (%p337) target = $region32
        $region31: #{tpu_custom_call.1} parent=19 // pred_region
          %s340 = sand.u32 %s49, 1
          %s341 = scalar_lea.sflag [#allocation13], %s340
          %s342 = sand.u32 %s136, 1
          %s343 = smul.addr %s342, 128
          %s344 = scalar_lea.vmem [#allocation14], %s343
          %s345 = sld [smem:[#allocation4 + %s49]]
          %s347 = ssub.s32 2048, 2048
          %348 = vsyncadd %s341, %s347
          %s349 = smul.addr %s345, 16
          %s350 = smul.addr %s349, 128
          %s351 = scalar_lea.hbm %s7, %s350
          %s352 = sshll.u32 %s344, 4
          %s353 = int_to_ptr.vmem [resolvable:$true] %s352
          %358 = dma.hbm_to_vmem [thread:$0]  %s351, 2048, %s353, %s341, 128, 128, 8
        $region32: #{tpu_custom_call.1} parent=19 // pred_fallthru
          _
        // Predicated region
        $region33: #{tpu_custom_call.1} parent=19 // pred_check
          %p359 = pneg %p174
        $region34: #{tpu_custom_call.1} parent=19 // pred_check_branch
          %361 = sbr.rel (%p359) target = $region36
        $region35: #{tpu_custom_call.1} parent=19 // pred_region
          %s362 = sand.u32 %s49, 1
          %s363 = scalar_lea.sflag [#allocation16], %s362
          %s364 = sand.u32 %s164, 1
          %s365 = smul.addr %s364, 64
          %s366 = scalar_lea.vmem [#allocation15], %s365
          %s367 = sld [smem:[#allocation3 + %s49]]
          %s369 = ssub.s32 1024, 1024
          %370 = vsyncadd %s363, %s369
          %s371 = smul.addr %s367, 16
          %s372 = smul.addr %s371, 64
          %s373 = scalar_lea.hbm %s8, %s372
          %s374 = sshll.u32 %s366, 4
          %s375 = int_to_ptr.vmem [resolvable:$true] %s374
          %380 = dma.hbm_to_vmem [thread:$0]  %s373, 1024, %s375, %s363, 64, 64, 4
        $region36: #{tpu_custom_call.1} parent=19 // pred_fallthru
          _
        // Predicated region
        $region37: #{tpu_custom_call.1} parent=19 // pred_check
          %p381 = pneg %p202
        $region38: #{tpu_custom_call.1} parent=19 // pred_check_branch
          %383 = sbr.rel (%p381) target = $region40
        $region39: #{tpu_custom_call.1} parent=19 // pred_region
          %s384 = sand.u32 %s49, 1
          %s385 = scalar_lea.sflag [#allocation16], %s384
          %s386 = sand.u32 %s192, 1
          %s387 = smul.addr %s386, 64
          %s388 = scalar_lea.vmem [#allocation17], %s387
          %s389 = sld [smem:[#allocation3 + %s49]]
          %s391 = ssub.s32 1024, 1024
          %392 = vsyncadd %s385, %s391
          %s393 = smul.addr %s389, 16
          %s394 = smul.addr %s393, 64
          %s395 = scalar_lea.hbm %s9, %s394
          %s396 = sshll.u32 %s388, 4
          %s397 = int_to_ptr.vmem [resolvable:$true] %s396
          %402 = dma.hbm_to_vmem [thread:$0]  %s395, 1024, %s397, %s385, 64, 64, 4
        $region40: #{tpu_custom_call.1} parent=19 // pred_fallthru
          _
        // Predicated region
        $region41: #{tpu_custom_call.1} parent=19 // pred_check
          %p403 = pneg %p230
        $region42: #{tpu_custom_call.1} parent=19 // pred_check_branch
          %405 = sbr.rel (%p403) target = $region44
        $region43: #{tpu_custom_call.1} parent=19 // pred_region
          %s406 = sand.u32 %s220, 1
          %s407 = scalar_lea.sflag [#allocation19], %s406
          %s408 = sand.u32 %s220, 1
          %s409 = smul.addr %s408, 8
          %s410 = scalar_lea.vmem [#allocation18], %s409
          %s411 = sld [smem:[#allocation3 + %s49]]
          %s413 = ssub.s32 128, 128
          %414 = vsyncadd %s407, %s413
          %s415 = smul.addr %s411, 128
          %s416 = scalar_lea.hbm %s10, %s415
          %s418 = sshll.u32 %s410, 4
          %s419 = int_to_ptr.vmem [resolvable:$true] %s418
          %421 = dma.hbm_to_vmem [thread:$0]  %s416, 128, %s419, %s407
        $region44: #{tpu_custom_call.1} parent=19 // pred_fallthru
          _
      $region20: #{tpu_custom_call.1} parent=5 // pred_fallthru
        _
      %p422 = scmp.le.s32.totalorder 1, %s49
      %p423 = scmp.lt.s32.totalorder %s49, 10
      %p424 = pnand %p422, %p423
      %p425 = pneg %p424
      // Predicated region
      $region45: #{tpu_custom_call.1} parent=5 // pred_check
        _
      $region46: #{tpu_custom_call.1} parent=5 // pred_check_branch
        %427 = sbr.rel (%p424) target = $region48
      $region47: #{tpu_custom_call.1} parent=5 // pred_region
        %s428 = ssub.s32 %s49, 1
        // Predicated region
        $region49: #{tpu_custom_call.1} parent=47 // pred_check
          %p429 = pneg %p70
        $region50: #{tpu_custom_call.1} parent=47 // pred_check_branch
          %431 = sbr.rel (%p429) target = $region52
        $region51: #{tpu_custom_call.1} parent=47 // pred_region
          %432 = dma.done [#allocation10], 16
        $region52: #{tpu_custom_call.1} parent=47 // pred_fallthru
          _
        %s433 = sand.u32 %s83, 1
        %s434 = scalar_lea.sflag [#allocation8], %s433
        %s435 = sand.u32 %s83, 1
        %s436 = smul.addr %s435, 64
        %s437 = scalar_lea.vmem [#allocation11], %s436
        // Predicated region
        $region53: #{tpu_custom_call.1} parent=47 // pred_check
          %p438 = pneg %p96
        $region54: #{tpu_custom_call.1} parent=47 // pred_check_branch
          %440 = sbr.rel (%p438) target = $region56
        $region55: #{tpu_custom_call.1} parent=47 // pred_region
          %441 = dma.done %s434, 1024
        $region56: #{tpu_custom_call.1} parent=47 // pred_fallthru
          _
        %s442 = sand.u32 %s54, 1
        %s443 = scalar_lea.sflag [#allocation13], %s442
        %s444 = sand.u32 %s111, 1
        %s445 = smul.addr %s444, 64
        %s446 = scalar_lea.vmem [#allocation12], %s445
        // Predicated region
        $region57: #{tpu_custom_call.1} parent=47 // pred_check
          %p447 = pneg %p124
        $region58: #{tpu_custom_call.1} parent=47 // pred_check_branch
          %449 = sbr.rel (%p447) target = $region60
        $region59: #{tpu_custom_call.1} parent=47 // pred_region
          %450 = dma.done %s443, 1024
        $region60: #{tpu_custom_call.1} parent=47 // pred_fallthru
          _
        %s451 = sand.u32 %s54, 1
        %s452 = scalar_lea.sflag [#allocation13], %s451
        %s453 = sand.u32 %s139, 1
        %s454 = smul.addr %s453, 128
        %s455 = scalar_lea.vmem [#allocation14], %s454
        // Predicated region
        $region61: #{tpu_custom_call.1} parent=47 // pred_check
          %p456 = pneg %p152
        $region62: #{tpu_custom_call.1} parent=47 // pred_check_branch
          %458 = sbr.rel (%p456) target = $region64
        $region63: #{tpu_custom_call.1} parent=47 // pred_region
          %459 = dma.done %s452, 2048
        $region64: #{tpu_custom_call.1} parent=47 // pred_fallthru
          _
        %s460 = sand.u32 %s54, 1
        %s461 = scalar_lea.sflag [#allocation16], %s460
        %s462 = sand.u32 %s167, 1
        %s463 = smul.addr %s462, 64
        %s464 = scalar_lea.vmem [#allocation15], %s463
        // Predicated region
        $region65: #{tpu_custom_call.1} parent=47 // pred_check
          %p465 = pneg %p180
        $region66: #{tpu_custom_call.1} parent=47 // pred_check_branch
          %467 = sbr.rel (%p465) target = $region68
        $region67: #{tpu_custom_call.1} parent=47 // pred_region
          %468 = dma.done %s461, 1024
        $region68: #{tpu_custom_call.1} parent=47 // pred_fallthru
          _
        %s469 = sand.u32 %s54, 1
        %s470 = scalar_lea.sflag [#allocation16], %s469
        %s471 = sand.u32 %s195, 1
        %s472 = smul.addr %s471, 64
        %s473 = scalar_lea.vmem [#allocation17], %s472
        // Predicated region
        $region69: #{tpu_custom_call.1} parent=47 // pred_check
          %p474 = pneg %p208
        $region70: #{tpu_custom_call.1} parent=47 // pred_check_branch
          %476 = sbr.rel (%p474) target = $region72
        $region71: #{tpu_custom_call.1} parent=47 // pred_region
          %477 = dma.done %s470, 1024
        $region72: #{tpu_custom_call.1} parent=47 // pred_fallthru
          _
        %s478 = sand.u32 %s223, 1
        %s479 = scalar_lea.sflag [#allocation19], %s478
        %s480 = sand.u32 %s223, 1
        %s481 = smul.addr %s480, 8
        %s482 = scalar_lea.vmem [#allocation18], %s481
        // Predicated region
        $region73: #{tpu_custom_call.1} parent=47 // pred_check
          %p483 = pneg %p236
        $region74: #{tpu_custom_call.1} parent=47 // pred_check_branch
          %485 = sbr.rel (%p483) target = $region76
        $region75: #{tpu_custom_call.1} parent=47 // pred_region
          %486 = dma.done %s479, 128
        $region76: #{tpu_custom_call.1} parent=47 // pred_fallthru
          _
        %487 = sfence
        %p488 = pneg %p70
        %p489 = pneg %p67
        %s490 = sand.u32 %s83, 1
        %s491 = scalar_lea.sflag [#allocation8], %s490
        %s492 = sand.u32 %s83, 1
        %s493 = smul.addr %s492, 64
        %s494 = scalar_lea.vmem [#allocation11], %s493
        %p495 = pneg %p96
        %p496 = pneg %p93
        %s497 = sand.u32 %s54, 1
        %s498 = scalar_lea.sflag [#allocation13], %s497
        %s499 = sand.u32 %s111, 1
        %s500 = smul.addr %s499, 64
        %s501 = scalar_lea.vmem [#allocation12], %s500
        %p502 = pneg %p124
        %p503 = pneg %p121
        %s504 = sand.u32 %s54, 1
        %s505 = scalar_lea.sflag [#allocation13], %s504
        %s506 = sand.u32 %s139, 1
        %s507 = smul.addr %s506, 128
        %s508 = scalar_lea.vmem [#allocation14], %s507
        %p509 = pneg %p152
        %p510 = pneg %p149
        %s511 = sand.u32 %s54, 1
        %s512 = scalar_lea.sflag [#allocation16], %s511
        %s513 = sand.u32 %s167, 1
        %s514 = smul.addr %s513, 64
        %s515 = scalar_lea.vmem [#allocation15], %s514
        %p516 = pneg %p180
        %p517 = pneg %p177
        %s518 = sand.u32 %s54, 1
        %s519 = scalar_lea.sflag [#allocation16], %s518
        %s520 = sand.u32 %s195, 1
        %s521 = smul.addr %s520, 64
        %s522 = scalar_lea.vmem [#allocation17], %s521
        %p523 = pneg %p208
        %p524 = pneg %p205
        %s525 = sand.u32 %s223, 1
        %s526 = scalar_lea.sflag [#allocation19], %s525
        %s527 = sand.u32 %s223, 1
        %s528 = smul.addr %s527, 8
        %s529 = scalar_lea.vmem [#allocation18], %s528
        %p530 = pneg %p236
        %p531 = pneg %p233
        %p532 = pneg %p264
        %p533 = pneg %p261
        %s534 = sand.u32 %s251, 1
        %s535 = scalar_lea.sflag [#allocation9], %s534
        %s536 = sand.u32 %s251, 1
        %s537 = smul.addr %s536, 128
        %s538 = scalar_lea.vmem [#allocation20], %s537
        %s539 = sld [smem:[#allocation3 + %s54]]
        %s540 = sld [smem:[#allocation4 + %s54]]
        %s541 = sld [smem:[#allocation3 + %s54]]
        %s542 = sld [smem:[#allocation3 + %s54]]
        %s543 = sld [smem:[#allocation3 + %s54]]
        %s544 = sld [smem:[#allocation5 + %s54]]
        %v546 = vld [vmem:[%s437] sm:$0xf]
        %v547 = vld [vmem:[%s437 + $0x4] sm:$0xf]
        %v548 = vld [vmem:[%s437 + $0x8] sm:$0xf]
        %v549 = vld [vmem:[%s437 + $0xc] sm:$0xf]
        %v550 = vld [vmem:[%s437 + $0x10] sm:$0xf]
        %v551 = vld [vmem:[%s437 + $0x14] sm:$0xf]
        %v552 = vld [vmem:[%s437 + $0x18] sm:$0xf]
        %v553 = vld [vmem:[%s437 + $0x1c] sm:$0xf]
        %v554 = vld [vmem:[%s437 + $0x20] sm:$0xf]
        %v555 = vld [vmem:[%s437 + $0x24] sm:$0xf]
        %v556 = vld [vmem:[%s437 + $0x28] sm:$0xf]
        %v557 = vld [vmem:[%s437 + $0x2c] sm:$0xf]
        %v558 = vld [vmem:[%s437 + $0x30] sm:$0xf]
        %v559 = vld [vmem:[%s437 + $0x34] sm:$0xf]
        %v560 = vld [vmem:[%s437 + $0x38] sm:$0xf]
        %v561 = vld [vmem:[%s437 + $0x3c] sm:$0xf]
        %v562 = vld [vmem:[%s446] sm:$0xf]
        %v563 = vld [vmem:[%s446 + $0x4] sm:$0xf]
        %v564 = vld [vmem:[%s446 + $0x8] sm:$0xf]
        %v565 = vld [vmem:[%s446 + $0xc] sm:$0xf]
        %v566 = vld [vmem:[%s446 + $0x10] sm:$0xf]
        %v567 = vld [vmem:[%s446 + $0x14] sm:$0xf]
        %v568 = vld [vmem:[%s446 + $0x18] sm:$0xf]
        %v569 = vld [vmem:[%s446 + $0x1c] sm:$0xf]
        %v570 = vld [vmem:[%s446 + $0x20] sm:$0xf]
        %v571 = vld [vmem:[%s446 + $0x24] sm:$0xf]
        %v572 = vld [vmem:[%s446 + $0x28] sm:$0xf]
        %v573 = vld [vmem:[%s446 + $0x2c] sm:$0xf]
        %v574 = vld [vmem:[%s446 + $0x30] sm:$0xf]
        %v575 = vld [vmem:[%s446 + $0x34] sm:$0xf]
        %v576 = vld [vmem:[%s446 + $0x38] sm:$0xf]
        %v577 = vld [vmem:[%s446 + $0x3c] sm:$0xf]
        %v594 = vunpack.c.l.b16 %v546
        %v595 = vunpack.c.l.b16 %v547
        %v596 = vunpack.c.l.b16 %v548
        %v597 = vunpack.c.l.b16 %v549
        %v598 = vunpack.c.l.b16 %v550
        %v599 = vunpack.c.l.b16 %v551
        %v600 = vunpack.c.l.b16 %v552
        %v601 = vunpack.c.l.b16 %v553
        %v602 = vunpack.c.l.b16 %v554
        %v603 = vunpack.c.l.b16 %v555
        %v604 = vunpack.c.l.b16 %v556
        %v605 = vunpack.c.l.b16 %v557
        %v606 = vunpack.c.l.b16 %v558
        %v607 = vunpack.c.l.b16 %v559
        %v608 = vunpack.c.l.b16 %v560
        %v609 = vunpack.c.l.b16 %v561
        %v610 = vpack.c.b16 %v595, %v594
        %v611 = vpack.c.b16 %v597, %v596
        %v612 = vpack.c.b16 %v599, %v598
        %v613 = vpack.c.b16 %v601, %v600
        %v614 = vpack.c.b16 %v603, %v602
        %v615 = vpack.c.b16 %v605, %v604
        %v616 = vpack.c.b16 %v607, %v606
        %v617 = vpack.c.b16 %v609, %v608
        %v642 = vunpack.c.l.b16 %v562
        %v643 = vunpack.c.l.b16 %v563
        %v644 = vunpack.c.l.b16 %v564
        %v645 = vunpack.c.l.b16 %v565
        %v646 = vunpack.c.l.b16 %v566
        %v647 = vunpack.c.l.b16 %v567
        %v648 = vunpack.c.l.b16 %v568
        %v649 = vunpack.c.l.b16 %v569
        %v650 = vunpack.c.l.b16 %v570
        %v651 = vunpack.c.l.b16 %v571
        %v652 = vunpack.c.l.b16 %v572
        %v653 = vunpack.c.l.b16 %v573
        %v654 = vunpack.c.l.b16 %v574
        %v655 = vunpack.c.l.b16 %v575
        %v656 = vunpack.c.l.b16 %v576
        %v657 = vunpack.c.l.b16 %v577
        %v658 = vpack.c.b16 %v643, %v642
        %v659 = vpack.c.b16 %v645, %v644
        %v660 = vpack.c.b16 %v647, %v646
        %v661 = vpack.c.b16 %v649, %v648
        %v662 = vpack.c.b16 %v651, %v650
        %v663 = vpack.c.b16 %v653, %v652
        %v664 = vpack.c.b16 %v655, %v654
        %v665 = vpack.c.b16 %v657, %v656
        %674 = vmatprep.subr.bf16.mxu0 0
        %675 = vmatpush1.bf16.msra.mxu0 %v665
        %676 = vmatprep.subr.bf16.mxu0 0
        %677 = vmatpush1.bf16.msra.mxu0 %v664
        %678 = vmatprep.subr.bf16.mxu0 0
        %679 = vmatpush1.bf16.msra.mxu0 %v663
        %680 = vmatprep.subr.bf16.mxu0 0
        %681 = vmatpush1.bf16.msra.mxu0 %v662
        %682 = vmatprep.subr.bf16.mxu0 0
        %683 = vmatpush1.bf16.msra.mxu0 %v661
        %684 = vmatprep.subr.bf16.mxu0 0
        %685 = vmatpush1.bf16.msra.mxu0 %v660
        %686 = vmatprep.subr.bf16.mxu0 0
        %687 = vmatpush1.bf16.msra.mxu0 %v659
        %688 = vmatprep.subr.bf16.mxu0 0
        %689 = vmatpush1.bf16.msra.mxu0 %v658
        %690 = vmatprep.subr.bf16.mxu0 0
        %691 = vmatpush2.bf16.msra.mxu0 0
        %692 = vmatprep.subr.bf16.mxu0 0
        %693 = vmatpush2.bf16.msra.mxu0 0
        %694 = vmatprep.subr.bf16.mxu0 0
        %695 = vmatpush2.bf16.msra.mxu0 0
        %696 = vmatprep.subr.bf16.mxu0 0
        %697 = vmatpush2.bf16.msra.mxu0 0
        %698 = vmatprep.subr.bf16.mxu0 0
        %699 = vmatpush2.bf16.msra.mxu0 0
        %700 = vmatprep.subr.bf16.mxu0 0
        %701 = vmatpush2.bf16.msra.mxu0 0
        %702 = vmatprep.subr.bf16.mxu0 0
        %703 = vmatpush2.bf16.msra.mxu0 0
        %704 = vmatprep.subr.bf16.mxu0 0
        %705 = vmatpush2.bf16.msra.mxu0 0
        %706 = vmatprep.mubr.bf16.mxu0 0
        %707 = vmatmul.mubr.bf16.gmra.mxu0 %v610
        %v708 = vpop.f32.mrf.mxu0
        %v709 = vadd.f32 0.0, %v708
        %v710 = vpop.f32.mrf.mxu0
        %v711 = vpop.f32.mrf.mxu0
        %v712 = vadd.f32 0.0, %v711
        %v713 = vpop.f32.mrf.mxu0
        %714 = vmatprep.mubr.bf16.mxu0 0
        %715 = vmatmul.mubr.bf16.gmra.mxu0 %v611
        %v716 = vpop.f32.mrf.mxu0
        %v717 = vadd.f32 0.0, %v716
        %v718 = vpop.f32.mrf.mxu0
        %v719 = vpop.f32.mrf.mxu0
        %v720 = vadd.f32 0.0, %v719
        %v721 = vpop.f32.mrf.mxu0
        %722 = vmatprep.mubr.bf16.mxu0 0
        %723 = vmatmul.mubr.bf16.gmra.mxu0 %v612
        %v724 = vpop.f32.mrf.mxu0
        %v725 = vadd.f32 0.0, %v724
        %v726 = vpop.f32.mrf.mxu0
        %v727 = vpop.f32.mrf.mxu0
        %v728 = vadd.f32 0.0, %v727
        %v729 = vpop.f32.mrf.mxu0
        %730 = vmatprep.mubr.bf16.mxu0 0
        %731 = vmatmul.mubr.bf16.gmra.mxu0 %v613
        %v732 = vpop.f32.mrf.mxu0
        %v733 = vadd.f32 0.0, %v732
        %v734 = vpop.f32.mrf.mxu0
        %v735 = vpop.f32.mrf.mxu0
        %v736 = vadd.f32 0.0, %v735
        %v737 = vpop.f32.mrf.mxu0
        %738 = vmatprep.mubr.bf16.mxu0 0
        %739 = vmatmul.mubr.bf16.gmra.mxu0 %v614
        %v740 = vpop.f32.mrf.mxu0
        %v741 = vadd.f32 0.0, %v740
        %v742 = vpop.f32.mrf.mxu0
        %v743 = vpop.f32.mrf.mxu0
        %v744 = vadd.f32 0.0, %v743
        %v745 = vpop.f32.mrf.mxu0
        %746 = vmatprep.mubr.bf16.mxu0 0
        %747 = vmatmul.mubr.bf16.gmra.mxu0 %v615
        %v748 = vpop.f32.mrf.mxu0
        %v749 = vadd.f32 0.0, %v748
        %v750 = vpop.f32.mrf.mxu0
        %v751 = vpop.f32.mrf.mxu0
        %v752 = vadd.f32 0.0, %v751
        %v753 = vpop.f32.mrf.mxu0
        %754 = vmatprep.mubr.bf16.mxu0 0
        %755 = vmatmul.mubr.bf16.gmra.mxu0 %v616
        %v756 = vpop.f32.mrf.mxu0
        %v757 = vadd.f32 0.0, %v756
        %v758 = vpop.f32.mrf.mxu0
        %v759 = vpop.f32.mrf.mxu0
        %v760 = vadd.f32 0.0, %v759
        %v761 = vpop.f32.mrf.mxu0
        %762 = vmatprep.mubr.bf16.mxu0 0
        %763 = vmatmul.mubr.bf16.gmra.mxu0 %v617
        %v764 = vpop.f32.mrf.mxu0
        %v765 = vadd.f32 0.0, %v764
        %v766 = vpop.f32.mrf.mxu0
        %v767 = vpop.f32.mrf.mxu0
        %v768 = vadd.f32 0.0, %v767
        %v769 = vpop.f32.mrf.mxu0
        %770 = vdwg.mxu0
        %s771 = sld [smem:[#allocation7 + %s54]]
        %v772 = vld [vmem:[%s455] sm:$0xff]
        %v773 = vld [vmem:[%s455 + $0x8] sm:$0xff]
        %v774 = vld [vmem:[%s455 + $0x10] sm:$0xff]
        %v775 = vld [vmem:[%s455 + $0x18] sm:$0xff]
        %v776 = vld [vmem:[%s455 + $0x20] sm:$0xff]
        %v777 = vld [vmem:[%s455 + $0x28] sm:$0xff]
        %v778 = vld [vmem:[%s455 + $0x30] sm:$0xff]
        %v779 = vld [vmem:[%s455 + $0x38] sm:$0xff]
        %v780 = vld [vmem:[%s455 + $0x40] sm:$0xff]
        %v781 = vld [vmem:[%s455 + $0x48] sm:$0xff]
        %v782 = vld [vmem:[%s455 + $0x50] sm:$0xff]
        %v783 = vld [vmem:[%s455 + $0x58] sm:$0xff]
        %v784 = vld [vmem:[%s455 + $0x60] sm:$0xff]
        %v785 = vld [vmem:[%s455 + $0x68] sm:$0xff]
        %v786 = vld [vmem:[%s455 + $0x70] sm:$0xff]
        %v787 = vld [vmem:[%s455 + $0x78] sm:$0xff]
        %v788 = vstv %s771
        %v789 = vmul.f32 %v788, %v772
        %v790 = vmul.f32 %v788, %v773
        %v791 = vmul.f32 %v788, %v774
        %v792 = vmul.f32 %v788, %v775
        %v793 = vmul.f32 %v788, %v776
        %v794 = vmul.f32 %v788, %v777
        %v795 = vmul.f32 %v788, %v778
        %v796 = vmul.f32 %v788, %v779
        %v797 = vmul.f32 %v788, %v780
        %v798 = vmul.f32 %v788, %v781
        %v799 = vmul.f32 %v788, %v782
        %v800 = vmul.f32 %v788, %v783
        %v801 = vmul.f32 %v788, %v784
        %v802 = vmul.f32 %v788, %v785
        %v803 = vmul.f32 %v788, %v786
        %v804 = vmul.f32 %v788, %v787
        %v805 = vadd.f32 %v789, %v709
        %v806 = vadd.f32 %v790, %v712
        %v807 = vadd.f32 %v791, %v717
        %v808 = vadd.f32 %v792, %v720
        %v809 = vadd.f32 %v793, %v725
        %v810 = vadd.f32 %v794, %v728
        %v811 = vadd.f32 %v795, %v733
        %v812 = vadd.f32 %v796, %v736
        %v813 = vadd.f32 %v797, %v741
        %v814 = vadd.f32 %v798, %v744
        %v815 = vadd.f32 %v799, %v749
        %v816 = vadd.f32 %v800, %v752
        %v817 = vadd.f32 %v801, %v757
        %v818 = vadd.f32 %v802, %v760
        %v819 = vadd.f32 %v803, %v765
        %v820 = vadd.f32 %v804, %v768
        %v821 = vpack.c.bf16 %v806, %v805
        %v822 = vpack.c.bf16 %v808, %v807
        %v823 = vpack.c.bf16 %v810, %v809
        %v824 = vpack.c.bf16 %v812, %v811
        %v825 = vpack.c.bf16 %v814, %v813
        %v826 = vpack.c.bf16 %v816, %v815
        %v827 = vpack.c.bf16 %v818, %v817
        %v828 = vpack.c.bf16 %v820, %v819
        %v829 = vld [vmem:[%s464] sm:$0xf]
        %v830 = vld [vmem:[%s464 + $0x4] sm:$0xf]
        %v831 = vld [vmem:[%s464 + $0x8] sm:$0xf]
        %v832 = vld [vmem:[%s464 + $0xc] sm:$0xf]
        %v833 = vld [vmem:[%s464 + $0x10] sm:$0xf]
        %v834 = vld [vmem:[%s464 + $0x14] sm:$0xf]
        %v835 = vld [vmem:[%s464 + $0x18] sm:$0xf]
        %v836 = vld [vmem:[%s464 + $0x1c] sm:$0xf]
        %v837 = vld [vmem:[%s464 + $0x20] sm:$0xf]
        %v838 = vld [vmem:[%s464 + $0x24] sm:$0xf]
        %v839 = vld [vmem:[%s464 + $0x28] sm:$0xf]
        %v840 = vld [vmem:[%s464 + $0x2c] sm:$0xf]
        %v841 = vld [vmem:[%s464 + $0x30] sm:$0xf]
        %v842 = vld [vmem:[%s464 + $0x34] sm:$0xf]
        %v843 = vld [vmem:[%s464 + $0x38] sm:$0xf]
        %v844 = vld [vmem:[%s464 + $0x3c] sm:$0xf]
        %v845 = vld [vmem:[%s482] sm:$0x1]
        %v846 = vlaneseq
        %v847 = vshrl.u32 %v846, 7
        %v848 = vsub.s32 0, %v847
        %v849 = vrot.slane %v845, %v848
        %v866 = vunpack.c.l.b16 %v829
        %v867 = vunpack.c.l.b16 %v830
        %v868 = vunpack.c.l.b16 %v831
        %v869 = vunpack.c.l.b16 %v832
        %v870 = vunpack.c.l.b16 %v833
        %v871 = vunpack.c.l.b16 %v834
        %v872 = vunpack.c.l.b16 %v835
        %v873 = vunpack.c.l.b16 %v836
        %v874 = vunpack.c.l.b16 %v837
        %v875 = vunpack.c.l.b16 %v838
        %v876 = vunpack.c.l.b16 %v839
        %v877 = vunpack.c.l.b16 %v840
        %v878 = vunpack.c.l.b16 %v841
        %v879 = vunpack.c.l.b16 %v842
        %v880 = vunpack.c.l.b16 %v843
        %v881 = vunpack.c.l.b16 %v844
        %v882 = vpack.c.b16 %v867, %v866
        %v883 = vpack.c.b16 %v869, %v868
        %v884 = vpack.c.b16 %v871, %v870
        %v885 = vpack.c.b16 %v873, %v872
        %v886 = vpack.c.b16 %v875, %v874
        %v887 = vpack.c.b16 %v877, %v876
        %v888 = vpack.c.b16 %v879, %v878
        %v889 = vpack.c.b16 %v881, %v880
        %898 = vmatprep.subr.bf16.mxu0 0
        %899 = vmatpush1.bf16.msra.mxu0 %v889
        %900 = vmatprep.subr.bf16.mxu0 0
        %901 = vmatpush1.bf16.msra.mxu0 %v888
        %902 = vmatprep.subr.bf16.mxu0 0
        %903 = vmatpush1.bf16.msra.mxu0 %v887
        %904 = vmatprep.subr.bf16.mxu0 0
        %905 = vmatpush1.bf16.msra.mxu0 %v886
        %906 = vmatprep.subr.bf16.mxu0 0
        %907 = vmatpush1.bf16.msra.mxu0 %v885
        %908 = vmatprep.subr.bf16.mxu0 0
        %909 = vmatpush1.bf16.msra.mxu0 %v884
        %910 = vmatprep.subr.bf16.mxu0 0
        %911 = vmatpush1.bf16.msra.mxu0 %v883
        %912 = vmatprep.subr.bf16.mxu0 0
        %913 = vmatpush1.bf16.msra.mxu0 %v882
        %914 = vmatprep.subr.bf16.mxu0 0
        %915 = vmatpush2.bf16.msra.mxu0 0
        %916 = vmatprep.subr.bf16.mxu0 0
        %917 = vmatpush2.bf16.msra.mxu0 0
        %918 = vmatprep.subr.bf16.mxu0 0
        %919 = vmatpush2.bf16.msra.mxu0 0
        %920 = vmatprep.subr.bf16.mxu0 0
        %921 = vmatpush2.bf16.msra.mxu0 0
        %922 = vmatprep.subr.bf16.mxu0 0
        %923 = vmatpush2.bf16.msra.mxu0 0
        %924 = vmatprep.subr.bf16.mxu0 0
        %925 = vmatpush2.bf16.msra.mxu0 0
        %926 = vmatprep.subr.bf16.mxu0 0
        %927 = vmatpush2.bf16.msra.mxu0 0
        %928 = vmatprep.subr.bf16.mxu0 0
        %929 = vmatpush2.bf16.msra.mxu0 0
        %930 = vmatprep.mubr.bf16.mxu0 0
        %931 = vmatmul.mubr.bf16.gmra.mxu0 %v821
        %v932 = vpop.f32.mrf.mxu0
        %v933 = vadd.f32 %v849, %v932
        %v934 = vpop.f32.mrf.mxu0
        %v935 = vpop.f32.mrf.mxu0
        %v936 = vadd.f32 %v849, %v935
        %v937 = vpop.f32.mrf.mxu0
        %938 = vmatprep.mubr.bf16.mxu0 0
        %939 = vmatmul.mubr.bf16.gmra.mxu0 %v822
        %v940 = vpop.f32.mrf.mxu0
        %v941 = vadd.f32 %v849, %v940
        %v942 = vpop.f32.mrf.mxu0
        %v943 = vpop.f32.mrf.mxu0
        %v944 = vadd.f32 %v849, %v943
        %v945 = vpop.f32.mrf.mxu0
        %946 = vmatprep.mubr.bf16.mxu0 0
        %947 = vmatmul.mubr.bf16.gmra.mxu0 %v823
        %v948 = vpop.f32.mrf.mxu0
        %v949 = vadd.f32 %v849, %v948
        %v950 = vpop.f32.mrf.mxu0
        %v951 = vpop.f32.mrf.mxu0
        %v952 = vadd.f32 %v849, %v951
        %v953 = vpop.f32.mrf.mxu0
        %954 = vmatprep.mubr.bf16.mxu0 0
        %955 = vmatmul.mubr.bf16.gmra.mxu0 %v824
        %v956 = vpop.f32.mrf.mxu0
        %v957 = vadd.f32 %v849, %v956
        %v958 = vpop.f32.mrf.mxu0
        %v959 = vpop.f32.mrf.mxu0
        %v960 = vadd.f32 %v849, %v959
        %v961 = vpop.f32.mrf.mxu0
        %962 = vmatprep.mubr.bf16.mxu0 0
        %963 = vmatmul.mubr.bf16.gmra.mxu0 %v825
        %v964 = vpop.f32.mrf.mxu0
        %v965 = vadd.f32 %v849, %v964
        %v966 = vpop.f32.mrf.mxu0
        %v967 = vpop.f32.mrf.mxu0
        %v968 = vadd.f32 %v849, %v967
        %v969 = vpop.f32.mrf.mxu0
        %970 = vmatprep.mubr.bf16.mxu0 0
        %971 = vmatmul.mubr.bf16.gmra.mxu0 %v826
        %v972 = vpop.f32.mrf.mxu0
        %v973 = vadd.f32 %v849, %v972
        %v974 = vpop.f32.mrf.mxu0
        %v975 = vpop.f32.mrf.mxu0
        %v976 = vadd.f32 %v849, %v975
        %v977 = vpop.f32.mrf.mxu0
        %978 = vmatprep.mubr.bf16.mxu0 0
        %979 = vmatmul.mubr.bf16.gmra.mxu0 %v827
        %v980 = vpop.f32.mrf.mxu0
        %v981 = vadd.f32 %v849, %v980
        %v982 = vpop.f32.mrf.mxu0
        %v983 = vpop.f32.mrf.mxu0
        %v984 = vadd.f32 %v849, %v983
        %v985 = vpop.f32.mrf.mxu0
        %986 = vmatprep.mubr.bf16.mxu0 0
        %987 = vmatmul.mubr.bf16.gmra.mxu0 %v828
        %v988 = vpop.f32.mrf.mxu0
        %v989 = vadd.f32 %v849, %v988
        %v990 = vpop.f32.mrf.mxu0
        %v991 = vpop.f32.mrf.mxu0
        %v992 = vadd.f32 %v849, %v991
        %v993 = vpop.f32.mrf.mxu0
        %994 = vdwg.mxu0
        %v995 = vmax.f32 %v933, 0.0
        %v996 = vmax.f32 %v936, 0.0
        %v997 = vmax.f32 %v941, 0.0
        %v998 = vmax.f32 %v944, 0.0
        %v999 = vmax.f32 %v949, 0.0
        %v1000 = vmax.f32 %v952, 0.0
        %v1001 = vmax.f32 %v957, 0.0
        %v1002 = vmax.f32 %v960, 0.0
        %v1003 = vmax.f32 %v965, 0.0
        %v1004 = vmax.f32 %v968, 0.0
        %v1005 = vmax.f32 %v973, 0.0
        %v1006 = vmax.f32 %v976, 0.0
        %v1007 = vmax.f32 %v981, 0.0
        %v1008 = vmax.f32 %v984, 0.0
        %v1009 = vmax.f32 %v989, 0.0
        %v1010 = vmax.f32 %v992, 0.0
        %v1011 = vpack.c.bf16 %v996, %v995
        %v1012 = vpack.c.bf16 %v998, %v997
        %v1013 = vpack.c.bf16 %v1000, %v999
        %v1014 = vpack.c.bf16 %v1002, %v1001
        %v1015 = vpack.c.bf16 %v1004, %v1003
        %v1016 = vpack.c.bf16 %v1006, %v1005
        %v1017 = vpack.c.bf16 %v1008, %v1007
        %v1018 = vpack.c.bf16 %v1010, %v1009
        %v1019 = vld [vmem:[%s473] sm:$0xf]
        %v1020 = vld [vmem:[%s473 + $0x4] sm:$0xf]
        %v1021 = vld [vmem:[%s473 + $0x8] sm:$0xf]
        %v1022 = vld [vmem:[%s473 + $0xc] sm:$0xf]
        %v1023 = vld [vmem:[%s473 + $0x10] sm:$0xf]
        %v1024 = vld [vmem:[%s473 + $0x14] sm:$0xf]
        %v1025 = vld [vmem:[%s473 + $0x18] sm:$0xf]
        %v1026 = vld [vmem:[%s473 + $0x1c] sm:$0xf]
        %v1027 = vld [vmem:[%s473 + $0x20] sm:$0xf]
        %v1028 = vld [vmem:[%s473 + $0x24] sm:$0xf]
        %v1029 = vld [vmem:[%s473 + $0x28] sm:$0xf]
        %v1030 = vld [vmem:[%s473 + $0x2c] sm:$0xf]
        %v1031 = vld [vmem:[%s473 + $0x30] sm:$0xf]
        %v1032 = vld [vmem:[%s473 + $0x34] sm:$0xf]
        %v1033 = vld [vmem:[%s473 + $0x38] sm:$0xf]
        %v1034 = vld [vmem:[%s473 + $0x3c] sm:$0xf]
        %v1035 = vld [vmem:[%s482 + $0x1] sm:$0x1]
        %v1036 = vlaneseq
        %v1037 = vshrl.u32 %v1036, 7
        %v1038 = vsub.s32 0, %v1037
        %v1039 = vrot.slane %v1035, %v1038
        %v1056 = vunpack.c.l.b16 %v1019
        %v1057 = vunpack.c.l.b16 %v1020
        %v1058 = vunpack.c.l.b16 %v1021
        %v1059 = vunpack.c.l.b16 %v1022
        %v1060 = vunpack.c.l.b16 %v1023
        %v1061 = vunpack.c.l.b16 %v1024
        %v1062 = vunpack.c.l.b16 %v1025
        %v1063 = vunpack.c.l.b16 %v1026
        %v1064 = vunpack.c.l.b16 %v1027
        %v1065 = vunpack.c.l.b16 %v1028
        %v1066 = vunpack.c.l.b16 %v1029
        %v1067 = vunpack.c.l.b16 %v1030
        %v1068 = vunpack.c.l.b16 %v1031
        %v1069 = vunpack.c.l.b16 %v1032
        %v1070 = vunpack.c.l.b16 %v1033
        %v1071 = vunpack.c.l.b16 %v1034
        %v1072 = vpack.c.b16 %v1057, %v1056
        %v1073 = vpack.c.b16 %v1059, %v1058
        %v1074 = vpack.c.b16 %v1061, %v1060
        %v1075 = vpack.c.b16 %v1063, %v1062
        %v1076 = vpack.c.b16 %v1065, %v1064
        %v1077 = vpack.c.b16 %v1067, %v1066
        %v1078 = vpack.c.b16 %v1069, %v1068
        %v1079 = vpack.c.b16 %v1071, %v1070
        %1088 = vmatprep.subr.bf16.mxu0 0
        %1089 = vmatpush1.bf16.msra.mxu0 %v1079
        %1090 = vmatprep.subr.bf16.mxu0 0
        %1091 = vmatpush1.bf16.msra.mxu0 %v1078
        %1092 = vmatprep.subr.bf16.mxu0 0
        %1093 = vmatpush1.bf16.msra.mxu0 %v1077
        %1094 = vmatprep.subr.bf16.mxu0 0
        %1095 = vmatpush1.bf16.msra.mxu0 %v1076
        %1096 = vmatprep.subr.bf16.mxu0 0
        %1097 = vmatpush1.bf16.msra.mxu0 %v1075
        %1098 = vmatprep.subr.bf16.mxu0 0
        %1099 = vmatpush1.bf16.msra.mxu0 %v1074
        %1100 = vmatprep.subr.bf16.mxu0 0
        %1101 = vmatpush1.bf16.msra.mxu0 %v1073
        %1102 = vmatprep.subr.bf16.mxu0 0
        %1103 = vmatpush1.bf16.msra.mxu0 %v1072
        %1104 = vmatprep.subr.bf16.mxu0 0
        %1105 = vmatpush2.bf16.msra.mxu0 0
        %1106 = vmatprep.subr.bf16.mxu0 0
        %1107 = vmatpush2.bf16.msra.mxu0 0
        %1108 = vmatprep.subr.bf16.mxu0 0
        %1109 = vmatpush2.bf16.msra.mxu0 0
        %1110 = vmatprep.subr.bf16.mxu0 0
        %1111 = vmatpush2.bf16.msra.mxu0 0
        %1112 = vmatprep.subr.bf16.mxu0 0
        %1113 = vmatpush2.bf16.msra.mxu0 0
        %1114 = vmatprep.subr.bf16.mxu0 0
        %1115 = vmatpush2.bf16.msra.mxu0 0
        %1116 = vmatprep.subr.bf16.mxu0 0
        %1117 = vmatpush2.bf16.msra.mxu0 0
        %1118 = vmatprep.subr.bf16.mxu0 0
        %1119 = vmatpush2.bf16.msra.mxu0 0
        %1120 = vmatprep.mubr.bf16.mxu0 0
        %1121 = vmatmul.mubr.bf16.gmra.mxu0 %v1011
        %v1122 = vpop.f32.mrf.mxu0
        %v1123 = vadd.f32 %v1039, %v1122
        %v1124 = vpop.f32.mrf.mxu0
        %v1125 = vpop.f32.mrf.mxu0
        %v1126 = vadd.f32 %v1039, %v1125
        %v1127 = vpop.f32.mrf.mxu0
        %1128 = vmatprep.mubr.bf16.mxu0 0
        %1129 = vmatmul.mubr.bf16.gmra.mxu0 %v1012
        %v1130 = vpop.f32.mrf.mxu0
        %v1131 = vadd.f32 %v1039, %v1130
        %v1132 = vpop.f32.mrf.mxu0
        %v1133 = vpop.f32.mrf.mxu0
        %v1134 = vadd.f32 %v1039, %v1133
        %v1135 = vpop.f32.mrf.mxu0
        %1136 = vmatprep.mubr.bf16.mxu0 0
        %1137 = vmatmul.mubr.bf16.gmra.mxu0 %v1013
        %v1138 = vpop.f32.mrf.mxu0
        %v1139 = vadd.f32 %v1039, %v1138
        %v1140 = vpop.f32.mrf.mxu0
        %v1141 = vpop.f32.mrf.mxu0
        %v1142 = vadd.f32 %v1039, %v1141
        %v1143 = vpop.f32.mrf.mxu0
        %1144 = vmatprep.mubr.bf16.mxu0 0
        %1145 = vmatmul.mubr.bf16.gmra.mxu0 %v1014
        %v1146 = vpop.f32.mrf.mxu0
        %v1147 = vadd.f32 %v1039, %v1146
        %v1148 = vpop.f32.mrf.mxu0
        %v1149 = vpop.f32.mrf.mxu0
        %v1150 = vadd.f32 %v1039, %v1149
        %v1151 = vpop.f32.mrf.mxu0
        %1152 = vmatprep.mubr.bf16.mxu0 0
        %1153 = vmatmul.mubr.bf16.gmra.mxu0 %v1015
        %v1154 = vpop.f32.mrf.mxu0
        %v1155 = vadd.f32 %v1039, %v1154
        %v1156 = vpop.f32.mrf.mxu0
        %v1157 = vpop.f32.mrf.mxu0
        %v1158 = vadd.f32 %v1039, %v1157
        %v1159 = vpop.f32.mrf.mxu0
        %1160 = vmatprep.mubr.bf16.mxu0 0
        %1161 = vmatmul.mubr.bf16.gmra.mxu0 %v1016
        %v1162 = vpop.f32.mrf.mxu0
        %v1163 = vadd.f32 %v1039, %v1162
        %v1164 = vpop.f32.mrf.mxu0
        %v1165 = vpop.f32.mrf.mxu0
        %v1166 = vadd.f32 %v1039, %v1165
        %v1167 = vpop.f32.mrf.mxu0
        %1168 = vmatprep.mubr.bf16.mxu0 0
        %1169 = vmatmul.mubr.bf16.gmra.mxu0 %v1017
        %v1170 = vpop.f32.mrf.mxu0
        %v1171 = vadd.f32 %v1039, %v1170
        %v1172 = vpop.f32.mrf.mxu0
        %v1173 = vpop.f32.mrf.mxu0
        %v1174 = vadd.f32 %v1039, %v1173
        %v1175 = vpop.f32.mrf.mxu0
        %1176 = vmatprep.mubr.bf16.mxu0 0
        %1177 = vmatmul.mubr.bf16.gmra.mxu0 %v1018
        %v1178 = vpop.f32.mrf.mxu0
        %v1179 = vadd.f32 %v1039, %v1178
        %v1180 = vpop.f32.mrf.mxu0
        %v1181 = vpop.f32.mrf.mxu0
        %v1182 = vadd.f32 %v1039, %v1181
        %v1183 = vpop.f32.mrf.mxu0
        %1184 = vdwg.mxu0
        %v1185 = vmax.f32 %v1123, 0.0
        %v1186 = vmax.f32 %v1126, 0.0
        %v1187 = vmax.f32 %v1131, 0.0
        %v1188 = vmax.f32 %v1134, 0.0
        %v1189 = vmax.f32 %v1139, 0.0
        %v1190 = vmax.f32 %v1142, 0.0
        %v1191 = vmax.f32 %v1147, 0.0
        %v1192 = vmax.f32 %v1150, 0.0
        %v1193 = vmax.f32 %v1155, 0.0
        %v1194 = vmax.f32 %v1158, 0.0
        %v1195 = vmax.f32 %v1163, 0.0
        %v1196 = vmax.f32 %v1166, 0.0
        %v1197 = vmax.f32 %v1171, 0.0
        %v1198 = vmax.f32 %v1174, 0.0
        %v1199 = vmax.f32 %v1179, 0.0
        %v1200 = vmax.f32 %v1182, 0.0
        %s1201 = sld [smem:[#allocation6 + %s54]]
        %p1202 = scmp.eq.s32.totalorder %s1201, 1
        // Predicated region
        $region77: #{tpu_custom_call.1} parent=47 // pred_check
          %p1203 = pneg %p1202
        $region78: #{tpu_custom_call.1} parent=47 // pred_check_branch
          %1205 = sbr.rel (%p1203) target = $region80
        $region79: #{tpu_custom_call.1} parent=47 // pred_region
          %1206 = vst [vmem:[%s538] sm:$0xff] %v1185
          %1207 = vst [vmem:[%s538 + $0x8] sm:$0xff] %v1186
          %1208 = vst [vmem:[%s538 + $0x10] sm:$0xff] %v1187
          %1209 = vst [vmem:[%s538 + $0x18] sm:$0xff] %v1188
          %1210 = vst [vmem:[%s538 + $0x20] sm:$0xff] %v1189
          %1211 = vst [vmem:[%s538 + $0x28] sm:$0xff] %v1190
          %1212 = vst [vmem:[%s538 + $0x30] sm:$0xff] %v1191
          %1213 = vst [vmem:[%s538 + $0x38] sm:$0xff] %v1192
          %1214 = vst [vmem:[%s538 + $0x40] sm:$0xff] %v1193
          %1215 = vst [vmem:[%s538 + $0x48] sm:$0xff] %v1194
          %1216 = vst [vmem:[%s538 + $0x50] sm:$0xff] %v1195
          %1217 = vst [vmem:[%s538 + $0x58] sm:$0xff] %v1196
          %1218 = vst [vmem:[%s538 + $0x60] sm:$0xff] %v1197
          %1219 = vst [vmem:[%s538 + $0x68] sm:$0xff] %v1198
          %1220 = vst [vmem:[%s538 + $0x70] sm:$0xff] %v1199
          %1221 = vst [vmem:[%s538 + $0x78] sm:$0xff] %v1200
        $region80: #{tpu_custom_call.1} parent=47 // pred_fallthru
          _
        %s1222 = sld [smem:[#allocation6 + %s54]]
        %p1223 = scmp.eq.s32.totalorder %s1222, 0
        // Predicated region
        $region81: #{tpu_custom_call.1} parent=47 // pred_check
          %p1224 = pneg %p1223
        $region82: #{tpu_custom_call.1} parent=47 // pred_check_branch
          %1226 = sbr.rel (%p1224) target = $region84
        $region83: #{tpu_custom_call.1} parent=47 // pred_region
          %v1227 = vld [vmem:[%s538] sm:$0xff]
          %v1228 = vld [vmem:[%s538 + $0x8] sm:$0xff]
          %v1229 = vld [vmem:[%s538 + $0x10] sm:$0xff]
          %v1230 = vld [vmem:[%s538 + $0x18] sm:$0xff]
          %v1231 = vld [vmem:[%s538 + $0x20] sm:$0xff]
          %v1232 = vld [vmem:[%s538 + $0x28] sm:$0xff]
          %v1233 = vld [vmem:[%s538 + $0x30] sm:$0xff]
          %v1234 = vld [vmem:[%s538 + $0x38] sm:$0xff]
          %v1235 = vld [vmem:[%s538 + $0x40] sm:$0xff]
          %v1236 = vld [vmem:[%s538 + $0x48] sm:$0xff]
          %v1237 = vld [vmem:[%s538 + $0x50] sm:$0xff]
          %v1238 = vld [vmem:[%s538 + $0x58] sm:$0xff]
          %v1239 = vld [vmem:[%s538 + $0x60] sm:$0xff]
          %v1240 = vld [vmem:[%s538 + $0x68] sm:$0xff]
          %v1241 = vld [vmem:[%s538 + $0x70] sm:$0xff]
          %v1242 = vld [vmem:[%s538 + $0x78] sm:$0xff]
          %v1243 = vadd.f32 %v1227, %v1185
          %v1244 = vadd.f32 %v1228, %v1186
          %v1245 = vadd.f32 %v1229, %v1187
          %v1246 = vadd.f32 %v1230, %v1188
          %v1247 = vadd.f32 %v1231, %v1189
          %v1248 = vadd.f32 %v1232, %v1190
          %v1249 = vadd.f32 %v1233, %v1191
          %v1250 = vadd.f32 %v1234, %v1192
          %v1251 = vadd.f32 %v1235, %v1193
          %v1252 = vadd.f32 %v1236, %v1194
          %v1253 = vadd.f32 %v1237, %v1195
          %v1254 = vadd.f32 %v1238, %v1196
          %v1255 = vadd.f32 %v1239, %v1197
          %v1256 = vadd.f32 %v1240, %v1198
          %v1257 = vadd.f32 %v1241, %v1199
          %v1258 = vadd.f32 %v1242, %v1200
          %1259 = vst [vmem:[%s538] sm:$0xff] %v1243
          %1260 = vst [vmem:[%s538 + $0x8] sm:$0xff] %v1244
          %1261 = vst [vmem:[%s538 + $0x10] sm:$0xff] %v1245
          %1262 = vst [vmem:[%s538 + $0x18] sm:$0xff] %v1246
          %1263 = vst [vmem:[%s538 + $0x20] sm:$0xff] %v1247
          %1264 = vst [vmem:[%s538 + $0x28] sm:$0xff] %v1248
          %1265 = vst [vmem:[%s538 + $0x30] sm:$0xff] %v1249
          %1266 = vst [vmem:[%s538 + $0x38] sm:$0xff] %v1250
          %1267 = vst [vmem:[%s538 + $0x40] sm:$0xff] %v1251
          %1268 = vst [vmem:[%s538 + $0x48] sm:$0xff] %v1252
          %1269 = vst [vmem:[%s538 + $0x50] sm:$0xff] %v1253
          %1270 = vst [vmem:[%s538 + $0x58] sm:$0xff] %v1254
          %1271 = vst [vmem:[%s538 + $0x60] sm:$0xff] %v1255
          %1272 = vst [vmem:[%s538 + $0x68] sm:$0xff] %v1256
          %1273 = vst [vmem:[%s538 + $0x70] sm:$0xff] %v1257
          %1274 = vst [vmem:[%s538 + $0x78] sm:$0xff] %v1258
        $region84: #{tpu_custom_call.1} parent=47 // pred_fallthru
          _
        %s1275 = sand.u32 %s251, 1
        %s1276 = scalar_lea.sflag [#allocation9], %s1275
        %s1277 = sand.u32 %s251, 1
        %s1278 = smul.addr %s1277, 128
        %s1279 = scalar_lea.vmem [#allocation20], %s1278
        // Predicated region
        $region85: #{tpu_custom_call.1} parent=47 // pred_check
          %p1280 = pneg %p261
        $region86: #{tpu_custom_call.1} parent=47 // pred_check_branch
          %1282 = sbr.rel (%p1280) target = $region88
        $region87: #{tpu_custom_call.1} parent=47 // pred_region
          %s1283 = sld [smem:[#allocation5 + %s54]]
          %s1285 = ssub.s32 2048, 2048
          %1286 = vsyncadd %s1276, %s1285
          %s1287 = smul.addr %s1283, 16
          %s1288 = smul.addr %s1287, 128
          %s1289 = scalar_lea.hbm %s11, %s1288
          %s1290 = sshll.u32 %s1279, 4
          %s1291 = int_to_ptr.vmem [resolvable:$true] %s1290
          %1296 = dma.vmem_to_hbm [thread:$0]  %s1291, 2048, %s1289, %s1276, 128, 128, 8
        $region88: #{tpu_custom_call.1} parent=47 // pred_fallthru
          _
      $region48: #{tpu_custom_call.1} parent=5 // pred_fallthru
        _
      %p1297 = scmp.le.s32.totalorder 2, %s49
      // Predicated region
      $region89: #{tpu_custom_call.1} parent=5 // pred_check
        %p1298 = pneg %p1297
      $region90: #{tpu_custom_call.1} parent=5 // pred_check_branch
        %1300 = sbr.rel (%p1298) target = $region92
      $region91: #{tpu_custom_call.1} parent=5 // pred_region
        %s1301 = ssub.s32 %s49, 2
        // Predicated region
        $region93: #{tpu_custom_call.1} parent=91 // pred_check
          %p1302 = pneg %p267
        $region94: #{tpu_custom_call.1} parent=91 // pred_check_branch
          %1304 = sbr.rel (%p1302) target = $region96
        $region95: #{tpu_custom_call.1} parent=91 // pred_region
          %s1305 = sand.u32 %s252, 1
          %s1306 = scalar_lea.sflag [#allocation9], %s1305
          %s1307 = sand.u32 %s252, 1
          %s1308 = smul.addr %s1307, 128
          %s1309 = scalar_lea.vmem [#allocation20], %s1308
          %1310 = dma.done %s1306, 2048
        $region96: #{tpu_custom_call.1} parent=91 // pred_fallthru
          _
      $region92: #{tpu_custom_call.1} parent=5 // pred_fallthru
        _
    $region6: #{tpu_custom_call.1} parent=1 // loop_footer
      %s53 = sadd.s32 1, %s49
    $region7: #{tpu_custom_call.1} parent=1 // loop_footer_branch
      %48 = sbr.rel target = $region3
    $region8: #{tpu_custom_call.1} parent=1 // loop_exit
      _
    %1311 = vsyncpa [#allocation8], 1
    %s1312 = scalar_lea.sflag [#allocation8], 1
    %1313 = vsyncpa %s1312, 1
    %1314 = vsyncpa [#allocation13], 1
    %s1315 = scalar_lea.sflag [#allocation13], 1
    %1316 = vsyncpa %s1315, 1
    %1317 = vsyncpa [#allocation16], 1
    %s1318 = scalar_lea.sflag [#allocation16], 1
    %1319 = vsyncpa %s1318, 1
    %1320 = vsyncpa [#allocation19], 1
    %s1321 = scalar_lea.sflag [#allocation19], 1
    %1322 = vsyncpa %s1321, 1
    %1323 = vsyncpa [#allocation9], 1
    %s1324 = scalar_lea.sflag [#allocation9], 1
    %1325 = vsyncpa %s1324, 1
    %1326 = vsyncpa [#allocation10], 1
    %s1327 = scalar_lea.sflag [#allocation10], 1
    %1328 = vsyncpa %s1327, 1

</llo_original>
